<compile_context>
chip_gen: v7x
topology: tpu7x:2x2x1
jax: 0.10.0
libtpu: 0.0.40
codegen_flags: <defaults>
</compile_context>

<pallas_src>
import jax
import jax.numpy as jnp
from jax.experimental import pallas as pl
from jax.experimental.pallas import tpu as pltpu

# ---- configuration (small, consistent with the module's __init__) ----------
BATCH = 8
X_SIZE = 16          # input_size
H_SIZE = 32          # num_units
R_SIZE = 16          # config.r_size
KEY_SIZE = 16        # config.key_size
MEM_CAP = 8          # config.mem_cap
KQ = H_SIZE // 4     # read-head fc output width (8)
F_BIAS = 1.0
TAU = 1.0            # gumbel-softmax temperature (self.tau)
TAU_SIG = 10.0 / 3.0 # gumbel-sigmoid temperature
COLS = 128           # lane width of every slab / packed buffer
MR = MEM_CAP * R_SIZE    # 128
MKQ = MEM_CAP * KQ       # 64

# ---- packed-weight row offsets (every segment starts at a multiple of 8) ----
_WBIG  = 0      # (64,  98) [W_full | W_full1], rows ordered concat0 = [x|h|r]
_BBIG  = 64     # (1,   98) [bias | bias1]
_W2SEP = 72     # (64,  96) W_full2 row-blocks routed to col-blocks [x@|h@|r@]
_B2    = 136    # (1,   32) bias2
_WXCU  = 144    # (64,  64) fc rows for [x|c|u_norm|pad], column-tiled over M
_HBIAS = 208    # (1,   64) fc bias + keys @ fc_key_rows, flattened over (m,kq)
_WMBD  = 216    # (128, 64) block-diagonal fc rows for hmem
_VECA  = 344    # (128,  8) block-structured vec_a (rows 64:128 zero)
_EXP   = 472    # (8,  128) one-hot(m) -> lane-block-m expander
_SEG   = 480    # (128, 16) segment-sum over m (extracts r)
_WFC1T = 608    # (32, 128) fc1 weight, column-tiled over M
_BFC1T = 640    # (1,  128) fc1 bias,   column-tiled over M
PACK_ROWS = 648
PACK_COLS = COLS

# ---- per-step input slab lane offsets ---------------------------------------
_SX, _SGR, _SGS, _SW = 0, 16, 24, 32   # x(16) | gumbel_read(8) | gumbel_sig(2) | w_onehot(8)

# ---- carried-state slab lane offsets ----------------------------------------
_ST_H, _ST_C, _ST_U, _ST_P = 0, 32, 64, 72   # h(32) | c(32) | u_t(8) | prev_read(8)

# ---- per-step output slab lane offsets --------------------------------------
_O_H, _O_R, _O_I = 0, 32, 48                 # new_h(32) | r(16) | read_idx(8)


def tardis_kernel(step_ref, init_st_ref, init_hmem_ref, w_ref,
                  out_ref, fin_st_ref, fin_hmem_ref,
                  st_scr, hmem_scr):
    f32 = jnp.float32
    t = pl.program_id(0)

    # t == 0: load the initial recurrent state into the VMEM-resident carry.
    @pl.when(t == 0)
    def _():
        st_scr[...] = init_st_ref[...]
        hmem_scr[...] = init_hmem_ref[...]

    step = step_ref[0]                                   # (B, 128)
    x = step[:, _SX:_SX + X_SIZE]
    gread = step[:, _SGR:_SGR + MEM_CAP]
    gsig = step[:, _SGS:_SGS + 2]
    w_onehot = step[:, _SW:_SW + MEM_CAP]

    st = st_scr[...]                                     # (B, 128) carried state
    h = st[:, _ST_H:_ST_H + H_SIZE]
    c = st[:, _ST_C:_ST_C + H_SIZE]
    u = st[:, _ST_U:_ST_U + MEM_CAP]
    prev = st[:, _ST_P:_ST_P + MEM_CAP]
    hmem = hmem_scr[...]                                 # (B, M*R) = (B, 128)

    W = w_ref

    # --- read head (lane-dense, all weights full-lane slices of wpack) -------
    # F.normalize(u_t, dim=1) == u / max(||u||, 1e-12): rsqrt -> EUP, no divide
    sumsq = jnp.sum(u * u, axis=1, keepdims=True)
    u_n = u * jax.lax.rsqrt(jnp.maximum(sumsq, 1e-24))

    xcu = jnp.concatenate(
        [x, c, u_n, jnp.zeros((BATCH, 8), f32)], axis=1)             # (B, 64)
    part_b = jnp.dot(xcu, W[_WXCU:_WXCU + 64, :],
                     preferred_element_type=f32)                     # (B, 128)
    part_m = jnp.dot(hmem, W[_WMBD:_WMBD + MR, :],
                     preferred_element_type=f32)                     # (B, 128)
    head = jnp.tanh(part_b + part_m + W[_HBIAS:_HBIAS + 1, :])       # lanes>=64 stay 0

    # bmm(tanh(head), vec_a) as one dense MXU dot with a block-structured vec_a
    scores = jnp.dot(head, W[_VECA:_VECA + COLS, :],
                     preferred_element_type=f32)[:, 0:MEM_CAP]       # (B, M)
    scores = scores - prev * 100.0

    # straight-through gumbel read: hard one-hot = argmax of perturbed logits
    # (softmax is monotone, so exp/sum/divide are unnecessary; exact ties give
    # multiple hot entries, matching torch.eq(y, ymax)).
    logits = (scores + gread) * TAU
    lmax = jnp.max(logits, axis=1, keepdims=True)
    read_idx = (logits == lmax).astype(f32)                          # (B, M)

    ridx_exp = jnp.dot(read_idx, W[_EXP:_EXP + MEM_CAP, :],
                       preferred_element_type=f32)                   # (B, 128)
    r = jnp.dot(ridx_exp * hmem, W[_SEG:_SEG + MR, :],
                preferred_element_type=f32)[:, 0:R_SIZE]             # (B, R)
    new_u = u + read_idx

    # --- gates + alpha/beta: ONE fused matmul on concat0 = [x|h|r] -----------
    concat0 = jnp.concatenate([x, h, r], axis=1)                     # (B, 64)
    big = (jnp.dot(concat0, W[_WBIG:_WBIG + 64, :],
                   preferred_element_type=f32)
           + W[_BBIG:_BBIG + 1, :])                                  # (B, 128)
    i_g = big[:, 0:H_SIZE]
    f_g = big[:, H_SIZE:2 * H_SIZE]
    o_g = big[:, 2 * H_SIZE:3 * H_SIZE]
    lin1 = big[:, 3 * H_SIZE:3 * H_SIZE + 2]

    gs = jax.nn.sigmoid((lin1 + gsig) * TAU_SIG)
    alpha = gs[:, 0:1]
    beta = gs[:, 1:2]

    # candidate cell: ONE block-separated W_full2 matmul; per-row scalars
    # alpha/beta commute with the matmul so they are applied on the outputs.
    p2 = jnp.dot(concat0, W[_W2SEP:_W2SEP + 64, :],
                 preferred_element_type=f32)                         # (B, 128)
    cand = jnp.tanh(p2[:, 0:H_SIZE]
                    + alpha * p2[:, H_SIZE:2 * H_SIZE]
                    + beta * p2[:, 2 * H_SIZE:3 * H_SIZE]
                    + W[_B2:_B2 + 1, 0:H_SIZE])
    new_c = c * jax.nn.sigmoid(f_g + F_BIAS) + jax.nn.sigmoid(i_g) * cand
    new_h = jnp.tanh(new_c) * jax.nn.sigmoid(o_g)

    # --- memory write: hmem + w*(fc1(new_h) - hmem), lane-dense --------------
    # memcnt < mem_cap  -> streamed one-hot at slot t ; else -> read_idx
    use_slab = (t < MEM_CAP).astype(f32)
    widx = w_onehot * use_slab + read_idx * (1.0 - use_slab)         # (B, M)
    widx_exp = jnp.dot(widx, W[_EXP:_EXP + MEM_CAP, :],
                       preferred_element_type=f32)                   # (B, 128)
    hw = (jnp.dot(new_h, W[_WFC1T:_WFC1T + H_SIZE, :],
                  preferred_element_type=f32)
          + W[_BFC1T:_BFC1T + 1, :])                                 # (B, 128)
    new_hmem = hmem + widx_exp * (hw - hmem)

    # --- carry state in VMEM, store per-step output (full-width) -------------
    packed_state = jnp.concatenate(
        [new_h, new_c, new_u, read_idx,
         jnp.zeros((BATCH, COLS - (_ST_P + MEM_CAP)), f32)], axis=1)
    st_scr[...] = packed_state
    hmem_scr[...] = new_hmem

    out_ref[0] = jnp.concatenate(
        [new_h, r, read_idx,
         jnp.zeros((BATCH, COLS - (_O_I + MEM_CAP)), f32)], axis=1)

    @pl.when(t == pl.num_programs(0) - 1)
    def _():
        fin_st_ref[...] = packed_state
        fin_hmem_ref[...] = new_hmem


# ---- parameter init (deterministic, orthogonal like helper.orthogonal_initializer)
def _orth(key, shape):
    return jax.nn.initializers.orthogonal()(key, shape, jnp.float32)


def init_params(key):
    ks = jax.random.split(key, 7)
    d_in = X_SIZE + R_SIZE + H_SIZE
    fc_in = X_SIZE + R_SIZE + H_SIZE + KEY_SIZE + MEM_CAP
    return {
        "W_full": _orth(ks[0], (d_in, 3 * H_SIZE)),
        "bias": jnp.zeros((1, 3 * H_SIZE), jnp.float32),
        "W_full1": _orth(ks[1], (d_in, 2)),
        "bias1": jnp.zeros((1, 2), jnp.float32),
        "W_full2": _orth(ks[2], (d_in, H_SIZE)),
        "bias2": jnp.zeros((1, H_SIZE), jnp.float32),
        "keys": _orth(ks[3], (MEM_CAP, KEY_SIZE)),
        "vec_a": _orth(ks[4], (KQ, 1)),
        "W_fc": _orth(ks[5], (fc_in, KQ)),        # fc.weight.T (x@W form)
        "b_fc": jnp.zeros((1, KQ), jnp.float32),
        "W_fc1": _orth(ks[6], (H_SIZE, R_SIZE)),  # fc1.weight.T
        "b_fc1": jnp.zeros((1, R_SIZE), jnp.float32),
    }


def pack_params(p):
    """Build the single loop-invariant packed weight buffer (run once)."""
    X, H, R, K, M = X_SIZE, H_SIZE, R_SIZE, KEY_SIZE, MEM_CAP
    buf = jnp.zeros((PACK_ROWS, PACK_COLS), jnp.float32)

    def put(b, r0, c0, m):
        return b.at[r0:r0 + m.shape[0], c0:c0 + m.shape[1]].set(m)

    # fused gate + alpha/beta weight (rows ordered [x|h|r] like concat0)
    buf = put(buf, _WBIG, 0, jnp.concatenate([p["W_full"], p["W_full1"]], axis=1))
    buf = put(buf, _BBIG, 0, jnp.concatenate([p["bias"], p["bias1"]], axis=1))

    # W_full2 row-blocks routed to separate column blocks: [x@W2 | h@W2 | r@W2]
    W2 = p["W_full2"]                     # (64, 32), rows ordered [x|h|r]
    buf = put(buf, _W2SEP, 0, W2[0:X])
    buf = put(buf, _W2SEP + X, H, W2[X:X + H])
    buf = put(buf, _W2SEP + X + H, 2 * H, W2[X + H:X + H + R])
    buf = put(buf, _B2, 0, p["bias2"])

    # read-head fc: W_fc row order follows cat([x, c, keys, hmem, u_norm])
    Wfc = p["W_fc"]                       # (88, KQ)
    Wx = Wfc[0:X]
    Wc = Wfc[X:X + H]
    Wk = Wfc[X + H:X + H + K]
    Wm = Wfc[X + H + K:X + H + K + R]
    Wu = Wfc[X + H + K + R:]
    Wxcu = jnp.concatenate([Wx, Wc, Wu], axis=0)          # (56, KQ)
    buf = put(buf, _WXCU, 0, jnp.tile(Wxcu, (1, M)))      # (56, 64), rows 56:64 zero
    # fc bias + keys contribution (loop-invariant), flattened over (m, kq)
    hbias = (jnp.dot(p["keys"], Wk) + p["b_fc"]).reshape(1, MKQ)
    buf = put(buf, _HBIAS, 0, hbias)
    # block-diagonal hmem weight and block-structured vec_a
    buf = put(buf, _WMBD, 0, jnp.kron(jnp.eye(M, dtype=jnp.float32), Wm))       # (128, 64)
    buf = put(buf, _VECA, 0, jnp.kron(jnp.eye(M, dtype=jnp.float32), p["vec_a"]))  # (64, 8)
    # one-hot expander and segment-sum matrices
    buf = put(buf, _EXP, 0, jnp.kron(jnp.eye(M, dtype=jnp.float32),
                                     jnp.ones((1, R), jnp.float32)))            # (8, 128)
    buf = put(buf, _SEG, 0, jnp.kron(jnp.ones((M, 1), jnp.float32),
                                     jnp.eye(R, dtype=jnp.float32)))            # (128, 16)
    # write projection (fc1), column-tiled over M
    buf = put(buf, _WFC1T, 0, jnp.tile(p["W_fc1"], (1, M)))                     # (32, 128)
    buf = put(buf, _BFC1T, 0, jnp.tile(p["b_fc1"], (1, M)))                     # (1, 128)
    return buf


def build_step_slab(x_seq, gumbel_read, gumbel_sig):
    """Pack the whole sequence of per-step inputs into one (T, B, 128) slab."""
    T = x_seq.shape[0]
    t_ids = jnp.arange(T)
    oh = jax.nn.one_hot(jnp.clip(t_ids, 0, MEM_CAP - 1), MEM_CAP, dtype=jnp.float32)
    oh = oh * (t_ids[:, None] < MEM_CAP).astype(jnp.float32)   # zeros once mem is full
    w_onehot = jnp.broadcast_to(oh[:, None, :], (T, BATCH, MEM_CAP))

    slab = jnp.zeros((T, BATCH, COLS), jnp.float32)
    slab = slab.at[:, :, _SX:_SX + X_SIZE].set(x_seq)
    slab = slab.at[:, :, _SGR:_SGR + MEM_CAP].set(gumbel_read)
    slab = slab.at[:, :, _SGS:_SGS + 2].set(gumbel_sig)
    slab = slab.at[:, :, _SW:_SW + MEM_CAP].set(w_onehot)
    return slab


def build_init_state(h0, c0):
    st = jnp.zeros((BATCH, COLS), jnp.float32)
    st = st.at[:, _ST_H:_ST_H + H_SIZE].set(h0)
    st = st.at[:, _ST_C:_ST_C + H_SIZE].set(c0)
    return st   # u_t and prev_read_location start at zero (_reset_mem)


@jax.jit
def tardis_sequence(step_slab, init_state, init_hmem2d, wpack):
    T = step_slab.shape[0]
    out_seq, fin_state, fin_hmem = pl.pallas_call(
        tardis_kernel,
        grid=(T,),
        in_specs=[
            pl.BlockSpec((1, BATCH, COLS), lambda t: (t, 0, 0)),   # streamed per-step slab
            pl.BlockSpec((BATCH, COLS), lambda t: (0, 0)),         # initial state (fetched once)
            pl.BlockSpec((BATCH, COLS), lambda t: (0, 0)),         # initial hmem  (fetched once)
            pl.BlockSpec((PACK_ROWS, PACK_COLS), lambda t: (0, 0)),  # weights (fetched once)
        ],
        out_specs=(
            pl.BlockSpec((1, BATCH, COLS), lambda t: (t, 0, 0)),   # per-step outputs
            pl.BlockSpec((BATCH, COLS), lambda t: (0, 0)),         # final packed state
            pl.BlockSpec((BATCH, COLS), lambda t: (0, 0)),         # final hmem (B, M*R)
        ),
        out_shape=(
            jax.ShapeDtypeStruct((T, BATCH, COLS), jnp.float32),
            jax.ShapeDtypeStruct((BATCH, COLS), jnp.float32),
            jax.ShapeDtypeStruct((BATCH, COLS), jnp.float32),
        ),
        scratch_shapes=[
            pltpu.VMEM((BATCH, COLS), jnp.float32),   # carried [h|c|u|prev] slab
            pltpu.VMEM((BATCH, COLS), jnp.float32),   # carried hmem (B, M*R)
        ],
        compiler_params=pltpu.CompilerParams(
            dimension_semantics=("arbitrary",)),
    )(step_slab, init_state, init_hmem2d, wpack)

    outputs = out_seq[:, :, _O_H:_O_H + H_SIZE + R_SIZE]   # per-step cat([new_h, r])
    new_h = fin_state[:, _ST_H:_ST_H + H_SIZE]
    new_c = fin_state[:, _ST_C:_ST_C + H_SIZE]
    new_u = fin_state[:, _ST_U:_ST_U + MEM_CAP]
    read_idx = fin_state[:, _ST_P:_ST_P + MEM_CAP]
    new_hmem = fin_hmem.reshape(BATCH, MEM_CAP, R_SIZE)
    return outputs, (new_h, new_c, new_hmem, new_u, read_idx)


def _gumbel(key, shape):
    u = jax.random.uniform(key, shape, jnp.float32)
    return -jnp.log(1e-20 - jnp.log(1e-20 + u))


if __name__ == "__main__":
    key = jax.random.PRNGKey(0)
    kp, kh, kc, kx, kg1, kg2 = jax.random.split(key, 6)

    params = init_params(kp)
    wpack = pack_params(params)     # loop-invariant, packed once

    T = 12                          # > MEM_CAP so both write paths execute
    x_seq = jax.random.normal(kx, (T, BATCH, X_SIZE), jnp.float32)
    # reset(): h,c ~ N(0,1) (+ tanh(zero biases)); _reset_mem(): zeros
    h0 = jax.random.normal(kh, (BATCH, H_SIZE), jnp.float32)
    c0 = jax.random.normal(kc, (BATCH, H_SIZE), jnp.float32)
    gumbel_read = _gumbel(kg1, (T, BATCH, MEM_CAP))
    gumbel_sig = _gumbel(kg2, (T, BATCH, 2))

    step_slab = build_step_slab(x_seq, gumbel_read, gumbel_sig)
    init_state = build_init_state(h0, c0)
    init_hmem = jnp.zeros((BATCH, COLS), jnp.float32)

    outputs, (new_h, new_c, new_hmem, new_u, read_idx) = tardis_sequence(
        step_slab, init_state, init_hmem, wpack)
    jax.block_until_ready(outputs)

    assert outputs.shape == (T, BATCH, H_SIZE + R_SIZE)
    assert new_h.shape == (BATCH, H_SIZE)
    assert new_c.shape == (BATCH, H_SIZE)
    assert new_hmem.shape == (BATCH, MEM_CAP, R_SIZE)
    assert new_u.shape == (BATCH, MEM_CAP)
    assert read_idx.shape == (BATCH, MEM_CAP)
    assert bool(jnp.all(jnp.isfinite(outputs)))
    assert bool(jnp.all(jnp.isfinite(new_hmem)))
    print("KERNEL_OK")
</pallas_src>

<mosaic_0001>
module attributes {stable_mosaic.version = 11 : i64} {
  func.func @tardis_kernel(%arg0: i32, %arg1: memref<1x8x128xf32, #tpu.memory_space<vmem>>, %arg2: memref<8x128xf32, #tpu.memory_space<vmem>>, %arg3: memref<8x128xf32, #tpu.memory_space<vmem>>, %arg4: memref<648x128xf32, #tpu.memory_space<vmem>>, %arg5: memref<1x8x128xf32, #tpu.memory_space<vmem>>, %arg6: memref<8x128xf32, #tpu.memory_space<vmem>>, %arg7: memref<8x128xf32, #tpu.memory_space<vmem>>, %arg8: memref<8x128xf32, #tpu.memory_space<vmem>>, %arg9: memref<8x128xf32, #tpu.memory_space<vmem>>) attributes {dimension_semantics = [#tpu.dimension_semantics<arbitrary>], iteration_bounds = array<i64: 12>, scalar_prefetch = 0 : i64, scratch_operands = 2 : i64, tpu.core_type = #tpu.core_type<tc>, window_params = [{transform_indices = @transform_0, window_bounds = array<i64: 1, 8, 128>}, {pipeline_mode = #tpu.pipeline_mode<synchronous>, transform_indices = @transform_1, window_bounds = array<i64: 8, 128>}, {pipeline_mode = #tpu.pipeline_mode<synchronous>, transform_indices = @transform_2, window_bounds = array<i64: 8, 128>}, {pipeline_mode = #tpu.pipeline_mode<synchronous>, transform_indices = @transform_3, window_bounds = array<i64: 648, 128>}, {transform_indices = @transform_4, window_bounds = array<i64: 1, 8, 128>}, {pipeline_mode = #tpu.pipeline_mode<synchronous>, transform_indices = @transform_5, window_bounds = array<i64: 8, 128>}, {pipeline_mode = #tpu.pipeline_mode<synchronous>, transform_indices = @transform_6, window_bounds = array<i64: 8, 128>}]} {
    %c0_i32 = arith.constant 0 : i32
    %0 = arith.cmpi eq, %arg0, %c0_i32 : i32
    %1 = arith.extui %0 : i1 to i32
    %c0_i32_0 = arith.constant 0 : i32
    %2 = arith.cmpi ne, %1, %c0_i32_0 : i32
    scf.if %2 {
      %c0_53 = arith.constant 0 : index
      %c0_54 = arith.constant 0 : index
      %144 = vector.load %arg2[%c0_53, %c0_54] : memref<8x128xf32, #tpu.memory_space<vmem>>, vector<8x128xf32>
      %c0_55 = arith.constant 0 : index
      %c0_56 = arith.constant 0 : index
      %145 = vector.load %arg8[%c0_55, %c0_56] : memref<8x128xf32, #tpu.memory_space<vmem>>, vector<8x128xf32>
      tpu.vector_store %arg8[%c0_55, %c0_56], %144 {strides = array<i32>} : memref<8x128xf32, #tpu.memory_space<vmem>>, vector<8x128xf32>,
      %c0_57 = arith.constant 0 : index
      %c0_58 = arith.constant 0 : index
      %146 = vector.load %arg3[%c0_57, %c0_58] : memref<8x128xf32, #tpu.memory_space<vmem>>, vector<8x128xf32>
      %c0_59 = arith.constant 0 : index
      %c0_60 = arith.constant 0 : index
      %147 = vector.load %arg9[%c0_59, %c0_60] : memref<8x128xf32, #tpu.memory_space<vmem>>, vector<8x128xf32>
      tpu.vector_store %arg9[%c0_59, %c0_60], %146 {strides = array<i32>} : memref<8x128xf32, #tpu.memory_space<vmem>>, vector<8x128xf32>,
    } else {
    }
    %c0 = arith.constant 0 : index
    %c0_1 = arith.constant 0 : index
    %c0_2 = arith.constant 0 : index
    %3 = vector.load %arg1[%c0, %c0_1, %c0_2] : memref<1x8x128xf32, #tpu.memory_space<vmem>>, vector<1x8x128xf32>
    %4 = vector.shape_cast %3 : vector<1x8x128xf32> to vector<8x128xf32>
    %5 = vector.extract_strided_slice %4 {offsets = [0, 0], sizes = [8, 16], strides = [1, 1]} : vector<8x128xf32> to vector<8x16xf32>
    %6 = vector.extract_strided_slice %4 {offsets = [0, 16], sizes = [8, 8], strides = [1, 1]} : vector<8x128xf32> to vector<8x8xf32>
    %7 = vector.extract_strided_slice %4 {offsets = [0, 24], sizes = [8, 2], strides = [1, 1]} : vector<8x128xf32> to vector<8x2xf32>
    %8 = vector.extract_strided_slice %4 {offsets = [0, 32], sizes = [8, 8], strides = [1, 1]} : vector<8x128xf32> to vector<8x8xf32>
    %c0_3 = arith.constant 0 : index
    %c0_4 = arith.constant 0 : index
    %9 = vector.load %arg8[%c0_3, %c0_4] : memref<8x128xf32, #tpu.memory_space<vmem>>, vector<8x128xf32>
    %10 = vector.extract_strided_slice %9 {offsets = [0, 0], sizes = [8, 32], strides = [1, 1]} : vector<8x128xf32> to vector<8x32xf32>
    %11 = vector.extract_strided_slice %9 {offsets = [0, 32], sizes = [8, 32], strides = [1, 1]} : vector<8x128xf32> to vector<8x32xf32>
    %12 = vector.extract_strided_slice %9 {offsets = [0, 64], sizes = [8, 8], strides = [1, 1]} : vector<8x128xf32> to vector<8x8xf32>
    %13 = vector.extract_strided_slice %9 {offsets = [0, 72], sizes = [8, 8], strides = [1, 1]} : vector<8x128xf32> to vector<8x8xf32>
    %c0_5 = arith.constant 0 : index
    %c0_6 = arith.constant 0 : index
    %14 = vector.load %arg9[%c0_5, %c0_6] : memref<8x128xf32, #tpu.memory_space<vmem>>, vector<8x128xf32>
    %15 = arith.mulf %12, %12 : vector<8x8xf32>
    %cst = arith.constant dense<0.000000e+00> : vector<8xf32>
    %16 = vector.multi_reduction <add>, %15, %cst [1] : vector<8x8xf32> to vector<8xf32>
    %17 = vector.shape_cast %16 : vector<8xf32> to vector<8x1xf32>
    %cst_7 = arith.constant 1.000000e-24 : f32
    %18 = vector.broadcast %cst_7 : f32 to vector<8x1xf32>
    %19 = arith.maximumf %17, %18 : vector<8x1xf32>
    %20 = math.rsqrt %19 : vector<8x1xf32>
    %21 = vector.broadcast %20 : vector<8x1xf32> to vector<8x8xf32>
    %22 = arith.mulf %12, %21 : vector<8x8xf32>
    %cst_8 = arith.constant 0.000000e+00 : f32
    %23 = vector.broadcast %cst_8 : f32 to vector<8x8xf32>
    %24 = tpu.concatenate %5, %11, %22, %23 in 1 : vector<8x16xf32>, vector<8x32xf32>, vector<8x8xf32>, vector<8x8xf32> -> vector<8x64xf32>
    %c144 = arith.constant 144 : index
    %c0_9 = arith.constant 0 : index
    %25 = vector.load %arg4[%c144, %c0_9] : memref<648x128xf32, #tpu.memory_space<vmem>>, vector<64x128xf32>
    %cst_10 = arith.constant dense<0.000000e+00> : vector<8x128xf32>
    %26 = tpu.matmul %24, %25, %cst_10 {dimension_numbers = #tpu.dot_dimension_numbers<[1], [0], [0], [1], [0, 0, 1, 1], [], []>} : vector<8x64xf32>, vector<64x128xf32>, vector<8x128xf32> -> vector<8x128xf32>
    %c216 = arith.constant 216 : index
    %c0_11 = arith.constant 0 : index
    %27 = vector.load %arg4[%c216, %c0_11] : memref<648x128xf32, #tpu.memory_space<vmem>>, vector<128x128xf32>
    %cst_12 = arith.constant dense<0.000000e+00> : vector<8x128xf32>
    %28 = tpu.matmul %14, %27, %cst_12 {dimension_numbers = #tpu.dot_dimension_numbers<[1], [0], [0], [1], [0, 0, 1, 1], [], []>} : vector<8x128xf32>, vector<128x128xf32>, vector<8x128xf32> -> vector<8x128xf32>
    %29 = arith.addf %26, %28 : vector<8x128xf32>
    %c208 = arith.constant 208 : index
    %c0_13 = arith.constant 0 : index
    %30 = vector.load %arg4[%c208, %c0_13] : memref<648x128xf32, #tpu.memory_space<vmem>>, vector<1x128xf32>
    %31 = vector.broadcast %30 : vector<1x128xf32> to vector<8x128xf32>
    %32 = arith.addf %29, %31 : vector<8x128xf32>
    %33 = math.tanh %32 : vector<8x128xf32>
    %c344 = arith.constant 344 : index
    %c0_14 = arith.constant 0 : index
    %34 = vector.load %arg4[%c344, %c0_14] : memref<648x128xf32, #tpu.memory_space<vmem>>, vector<128x128xf32>
    %cst_15 = arith.constant dense<0.000000e+00> : vector<8x128xf32>
    %35 = tpu.matmul %33, %34, %cst_15 {dimension_numbers = #tpu.dot_dimension_numbers<[1], [0], [0], [1], [0, 0, 1, 1], [], []>} : vector<8x128xf32>, vector<128x128xf32>, vector<8x128xf32> -> vector<8x128xf32>
    %36 = vector.extract_strided_slice %35 {offsets = [0, 0], sizes = [8, 8], strides = [1, 1]} : vector<8x128xf32> to vector<8x8xf32>
    %cst_16 = arith.constant 1.000000e+02 : f32
    %37 = vector.broadcast %cst_16 : f32 to vector<8x8xf32>
    %38 = arith.mulf %13, %37 : vector<8x8xf32>
    %39 = arith.subf %36, %38 : vector<8x8xf32>
    %40 = arith.addf %39, %6 : vector<8x8xf32>
    %cst_17 = arith.constant 1.000000e+00 : f32
    %41 = vector.broadcast %cst_17 : f32 to vector<8x8xf32>
    %42 = arith.mulf %40, %41 : vector<8x8xf32>
    %cst_18 = arith.constant dense<0xFF800000> : vector<8xf32>
    %43 = vector.multi_reduction <maximumf>, %42, %cst_18 [1] : vector<8x8xf32> to vector<8xf32>
    %44 = vector.shape_cast %43 : vector<8xf32> to vector<8x1xf32>
    %45 = vector.broadcast %44 : vector<8x1xf32> to vector<8x8xf32>
    %46 = arith.cmpf oeq, %42, %45 : vector<8x8xf32>
    %47 = arith.extui %46 : vector<8x8xi1> to vector<8x8xi32>
    %48 = arith.sitofp %47 : vector<8x8xi32> to vector<8x8xf32>
    %c472 = arith.constant 472 : index
    %c0_19 = arith.constant 0 : index
    %49 = vector.load %arg4[%c472, %c0_19] : memref<648x128xf32, #tpu.memory_space<vmem>>, vector<8x128xf32>
    %cst_20 = arith.constant dense<0.000000e+00> : vector<8x128xf32>
    %50 = tpu.matmul %48, %49, %cst_20 {dimension_numbers = #tpu.dot_dimension_numbers<[1], [0], [0], [1], [0, 0, 1, 1], [], []>} : vector<8x8xf32>, vector<8x128xf32>, vector<8x128xf32> -> vector<8x128xf32>
    %51 = arith.mulf %50, %14 : vector<8x128xf32>
    %c480 = arith.constant 480 : index
    %c0_21 = arith.constant 0 : index
    %52 = vector.load %arg4[%c480, %c0_21] : memref<648x128xf32, #tpu.memory_space<vmem>>, vector<128x128xf32>
    %cst_22 = arith.constant dense<0.000000e+00> : vector<8x128xf32>
    %53 = tpu.matmul %51, %52, %cst_22 {dimension_numbers = #tpu.dot_dimension_numbers<[1], [0], [0], [1], [0, 0, 1, 1], [], []>} : vector<8x128xf32>, vector<128x128xf32>, vector<8x128xf32> -> vector<8x128xf32>
    %54 = vector.extract_strided_slice %53 {offsets = [0, 0], sizes = [8, 16], strides = [1, 1]} : vector<8x128xf32> to vector<8x16xf32>
    %55 = arith.addf %12, %48 : vector<8x8xf32>
    %56 = tpu.concatenate %5, %10, %54 in 1 : vector<8x16xf32>, vector<8x32xf32>, vector<8x16xf32> -> vector<8x64xf32>
    %c0_23 = arith.constant 0 : index
    %c0_24 = arith.constant 0 : index
    %57 = vector.load %arg4[%c0_23, %c0_24] : memref<648x128xf32, #tpu.memory_space<vmem>>, vector<64x128xf32>
    %cst_25 = arith.constant dense<0.000000e+00> : vector<8x128xf32>
    %58 = tpu.matmul %56, %57, %cst_25 {dimension_numbers = #tpu.dot_dimension_numbers<[1], [0], [0], [1], [0, 0, 1, 1], [], []>} : vector<8x64xf32>, vector<64x128xf32>, vector<8x128xf32> -> vector<8x128xf32>
    %c64 = arith.constant 64 : index
    %c0_26 = arith.constant 0 : index
    %59 = vector.load %arg4[%c64, %c0_26] : memref<648x128xf32, #tpu.memory_space<vmem>>, vector<1x128xf32>
    %60 = vector.broadcast %59 : vector<1x128xf32> to vector<8x128xf32>
    %61 = arith.addf %58, %60 : vector<8x128xf32>
    %62 = vector.extract_strided_slice %61 {offsets = [0, 0], sizes = [8, 32], strides = [1, 1]} : vector<8x128xf32> to vector<8x32xf32>
    %63 = vector.extract_strided_slice %61 {offsets = [0, 32], sizes = [8, 32], strides = [1, 1]} : vector<8x128xf32> to vector<8x32xf32>
    %64 = vector.extract_strided_slice %61 {offsets = [0, 64], sizes = [8, 32], strides = [1, 1]} : vector<8x128xf32> to vector<8x32xf32>
    %65 = vector.extract_strided_slice %61 {offsets = [0, 96], sizes = [8, 2], strides = [1, 1]} : vector<8x128xf32> to vector<8x2xf32>
    %66 = arith.addf %65, %7 : vector<8x2xf32>
    %cst_27 = arith.constant 3.33333325 : f32
    %67 = vector.broadcast %cst_27 : f32 to vector<8x2xf32>
    %68 = arith.mulf %66, %67 : vector<8x2xf32>
    %69 = arith.negf %68 : vector<8x2xf32>
    %70 = math.exp %69 : vector<8x2xf32>
    %cst_28 = arith.constant 1.000000e+00 : f32
    %71 = vector.broadcast %cst_28 : f32 to vector<8x2xf32>
    %72 = arith.addf %71, %70 : vector<8x2xf32>
    %73 = arith.divf %71, %72 : vector<8x2xf32>
    %74 = vector.extract_strided_slice %73 {offsets = [0, 0], sizes = [8, 1], strides = [1, 1]} : vector<8x2xf32> to vector<8x1xf32>
    %75 = vector.extract_strided_slice %73 {offsets = [0, 1], sizes = [8, 1], strides = [1, 1]} : vector<8x2xf32> to vector<8x1xf32>
    %c72 = arith.constant 72 : index
    %c0_29 = arith.constant 0 : index
    %76 = vector.load %arg4[%c72, %c0_29] : memref<648x128xf32, #tpu.memory_space<vmem>>, vector<64x128xf32>
    %cst_30 = arith.constant dense<0.000000e+00> : vector<8x128xf32>
    %77 = tpu.matmul %56, %76, %cst_30 {dimension_numbers = #tpu.dot_dimension_numbers<[1], [0], [0], [1], [0, 0, 1, 1], [], []>} : vector<8x64xf32>, vector<64x128xf32>, vector<8x128xf32> -> vector<8x128xf32>
    %78 = vector.extract_strided_slice %77 {offsets = [0, 0], sizes = [8, 32], strides = [1, 1]} : vector<8x128xf32> to vector<8x32xf32>
    %79 = vector.extract_strided_slice %77 {offsets = [0, 32], sizes = [8, 32], strides = [1, 1]} : vector<8x128xf32> to vector<8x32xf32>
    %80 = vector.broadcast %74 : vector<8x1xf32> to vector<8x32xf32>
    %81 = arith.mulf %80, %79 : vector<8x32xf32>
    %82 = arith.addf %78, %81 : vector<8x32xf32>
    %83 = vector.extract_strided_slice %77 {offsets = [0, 64], sizes = [8, 32], strides = [1, 1]} : vector<8x128xf32> to vector<8x32xf32>
    %84 = vector.broadcast %75 : vector<8x1xf32> to vector<8x32xf32>
    %85 = arith.mulf %84, %83 : vector<8x32xf32>
    %86 = arith.addf %82, %85 : vector<8x32xf32>
    %c136 = arith.constant 136 : index
    %c0_31 = arith.constant 0 : index
    %87 = vector.load %arg4[%c136, %c0_31] : memref<648x128xf32, #tpu.memory_space<vmem>>, vector<1x32xf32>
    %88 = vector.broadcast %87 : vector<1x32xf32> to vector<8x32xf32>
    %89 = arith.addf %86, %88 : vector<8x32xf32>
    %90 = math.tanh %89 : vector<8x32xf32>
    %cst_32 = arith.constant 1.000000e+00 : f32
    %91 = vector.broadcast %cst_32 : f32 to vector<8x32xf32>
    %92 = arith.addf %63, %91 : vector<8x32xf32>
    %93 = arith.negf %92 : vector<8x32xf32>
    %94 = math.exp %93 : vector<8x32xf32>
    %cst_33 = arith.constant 1.000000e+00 : f32
    %95 = vector.broadcast %cst_33 : f32 to vector<8x32xf32>
    %96 = arith.addf %95, %94 : vector<8x32xf32>
    %97 = arith.divf %95, %96 : vector<8x32xf32>
    %98 = arith.mulf %11, %97 : vector<8x32xf32>
    %99 = arith.negf %62 : vector<8x32xf32>
    %100 = math.exp %99 : vector<8x32xf32>
    %cst_34 = arith.constant 1.000000e+00 : f32
    %101 = vector.broadcast %cst_34 : f32 to vector<8x32xf32>
    %102 = arith.addf %101, %100 : vector<8x32xf32>
    %103 = arith.divf %101, %102 : vector<8x32xf32>
    %104 = arith.mulf %103, %90 : vector<8x32xf32>
    %105 = arith.addf %98, %104 : vector<8x32xf32>
    %106 = math.tanh %105 : vector<8x32xf32>
    %107 = arith.negf %64 : vector<8x32xf32>
    %108 = math.exp %107 : vector<8x32xf32>
    %cst_35 = arith.constant 1.000000e+00 : f32
    %109 = vector.broadcast %cst_35 : f32 to vector<8x32xf32>
    %110 = arith.addf %109, %108 : vector<8x32xf32>
    %111 = arith.divf %109, %110 : vector<8x32xf32>
    %112 = arith.mulf %106, %111 : vector<8x32xf32>
    %c8_i32 = arith.constant 8 : i32
    %113 = arith.cmpi slt, %arg0, %c8_i32 : i32
    %114 = arith.extui %113 : i1 to i32
    %115 = arith.sitofp %114 : i32 to f32
    %116 = vector.broadcast %115 : f32 to vector<8x8xf32>
    %117 = arith.mulf %8, %116 : vector<8x8xf32>
    %cst_36 = arith.constant 1.000000e+00 : f32
    %118 = arith.subf %cst_36, %115 : f32
    %119 = vector.broadcast %118 : f32 to vector<8x8xf32>
    %120 = arith.mulf %48, %119 : vector<8x8xf32>
    %121 = arith.addf %117, %120 : vector<8x8xf32>
    %c472_37 = arith.constant 472 : index
    %c0_38 = arith.constant 0 : index
    %122 = vector.load %arg4[%c472_37, %c0_38] : memref<648x128xf32, #tpu.memory_space<vmem>>, vector<8x128xf32>
    %cst_39 = arith.constant dense<0.000000e+00> : vector<8x128xf32>
    %123 = tpu.matmul %121, %122, %cst_39 {dimension_numbers = #tpu.dot_dimension_numbers<[1], [0], [0], [1], [0, 0, 1, 1], [], []>} : vector<8x8xf32>, vector<8x128xf32>, vector<8x128xf32> -> vector<8x128xf32>
    %c608 = arith.constant 608 : index
    %c0_40 = arith.constant 0 : index
    %124 = vector.load %arg4[%c608, %c0_40] : memref<648x128xf32, #tpu.memory_space<vmem>>, vector<32x128xf32>
    %cst_41 = arith.constant dense<0.000000e+00> : vector<8x128xf32>
    %125 = tpu.matmul %112, %124, %cst_41 {dimension_numbers = #tpu.dot_dimension_numbers<[1], [0], [0], [1], [0, 0, 1, 1], [], []>} : vector<8x32xf32>, vector<32x128xf32>, vector<8x128xf32> -> vector<8x128xf32>
    %c640 = arith.constant 640 : index
    %c0_42 = arith.constant 0 : index
    %126 = vector.load %arg4[%c640, %c0_42] : memref<648x128xf32, #tpu.memory_space<vmem>>, vector<1x128xf32>
    %127 = vector.broadcast %126 : vector<1x128xf32> to vector<8x128xf32>
    %128 = arith.addf %125, %127 : vector<8x128xf32>
    %129 = arith.subf %128, %14 : vector<8x128xf32>
    %130 = arith.mulf %123, %129 : vector<8x128xf32>
    %131 = arith.addf %14, %130 : vector<8x128xf32>
    %cst_43 = arith.constant 0.000000e+00 : f32
    %132 = vector.broadcast %cst_43 : f32 to vector<8x48xf32>
    %133 = tpu.concatenate %112, %105, %55, %48, %132 in 1 : vector<8x32xf32>, vector<8x32xf32>, vector<8x8xf32>, vector<8x8xf32>, vector<8x48xf32> -> vector<8x128xf32>
    %c0_44 = arith.constant 0 : index
    %c0_45 = arith.constant 0 : index
    %134 = vector.load %arg8[%c0_44, %c0_45] : memref<8x128xf32, #tpu.memory_space<vmem>>, vector<8x128xf32>
    tpu.vector_store %arg8[%c0_44, %c0_45], %133 {strides = array<i32>} : memref<8x128xf32, #tpu.memory_space<vmem>>, vector<8x128xf32>,
    %c0_46 = arith.constant 0 : index
    %c0_47 = arith.constant 0 : index
    %135 = vector.load %arg9[%c0_46, %c0_47] : memref<8x128xf32, #tpu.memory_space<vmem>>, vector<8x128xf32>
    tpu.vector_store %arg9[%c0_46, %c0_47], %131 {strides = array<i32>} : memref<8x128xf32, #tpu.memory_space<vmem>>, vector<8x128xf32>,
    %cst_48 = arith.constant 0.000000e+00 : f32
    %136 = vector.broadcast %cst_48 : f32 to vector<8x72xf32>
    %137 = tpu.concatenate %112, %54, %48, %136 in 1 : vector<8x32xf32>, vector<8x16xf32>, vector<8x8xf32>, vector<8x72xf32> -> vector<8x128xf32>
    %c0_49 = arith.constant 0 : index
    %c0_50 = arith.constant 0 : index
    %c0_51 = arith.constant 0 : index
    %138 = vector.load %arg5[%c0_49, %c0_50, %c0_51] : memref<1x8x128xf32, #tpu.memory_space<vmem>>, vector<1x8x128xf32>
    %139 = vector.shape_cast %138 : vector<1x8x128xf32> to vector<8x128xf32>
    %140 = vector.shape_cast %137 : vector<8x128xf32> to vector<1x8x128xf32>
    tpu.vector_store %arg5[%c0_49, %c0_50, %c0_51], %140 {strides = array<i32>} : memref<1x8x128xf32, #tpu.memory_space<vmem>>, vector<1x8x128xf32>,
    %c11_i32 = arith.constant 11 : i32
    %141 = arith.cmpi eq, %arg0, %c11_i32 : i32
    %142 = arith.extui %141 : i1 to i32
    %c0_i32_52 = arith.constant 0 : i32
    %143 = arith.cmpi ne, %142, %c0_i32_52 : i32
    scf.if %143 {
      %c0_53 = arith.constant 0 : index
      %c0_54 = arith.constant 0 : index
      %144 = vector.load %arg6[%c0_53, %c0_54] : memref<8x128xf32, #tpu.memory_space<vmem>>, vector<8x128xf32>
      tpu.vector_store %arg6[%c0_53, %c0_54], %133 {strides = array<i32>} : memref<8x128xf32, #tpu.memory_space<vmem>>, vector<8x128xf32>,
      %c0_55 = arith.constant 0 : index
      %c0_56 = arith.constant 0 : index
      %145 = vector.load %arg7[%c0_55, %c0_56] : memref<8x128xf32, #tpu.memory_space<vmem>>, vector<8x128xf32>
      tpu.vector_store %arg7[%c0_55, %c0_56], %131 {strides = array<i32>} : memref<8x128xf32, #tpu.memory_space<vmem>>, vector<8x128xf32>,
    } else {
    }
    return
  }
  func.func @transform_0(%arg0: i32) -> (i32, i32, i32) {
    %c0_i32 = arith.constant 0 : i32
    %c0_i32_0 = arith.constant 0 : i32
    %c0_i32_1 = arith.constant 0 : i32
    return %arg0, %c0_i32, %c0_i32_0 : i32, i32, i32
  }
  func.func @transform_1(%arg0: i32) -> (i32, i32) {
    %c0_i32 = arith.constant 0 : i32
    %c0_i32_0 = arith.constant 0 : i32
    %c0_i32_1 = arith.constant 0 : i32
    return %c0_i32, %c0_i32_0 : i32, i32
  }
  func.func @transform_2(%arg0: i32) -> (i32, i32) {
    %c0_i32 = arith.constant 0 : i32
    %c0_i32_0 = arith.constant 0 : i32
    %c0_i32_1 = arith.constant 0 : i32
    return %c0_i32, %c0_i32_0 : i32, i32
  }
  func.func @transform_3(%arg0: i32) -> (i32, i32) {
    %c0_i32 = arith.constant 0 : i32
    %c0_i32_0 = arith.constant 0 : i32
    %c0_i32_1 = arith.constant 0 : i32
    return %c0_i32, %c0_i32_0 : i32, i32
  }
  func.func @transform_4(%arg0: i32) -> (i32, i32, i32) {
    %c0_i32 = arith.constant 0 : i32
    %c0_i32_0 = arith.constant 0 : i32
    %c0_i32_1 = arith.constant 0 : i32
    return %arg0, %c0_i32, %c0_i32_0 : i32, i32, i32
  }
  func.func @transform_5(%arg0: i32) -> (i32, i32) {
    %c0_i32 = arith.constant 0 : i32
    %c0_i32_0 = arith.constant 0 : i32
    %c0_i32_1 = arith.constant 0 : i32
    return %c0_i32, %c0_i32_0 : i32, i32
  }
  func.func @transform_6(%arg0: i32) -> (i32, i32) {
    %c0_i32 = arith.constant 0 : i32
    %c0_i32_0 = arith.constant 0 : i32
    %c0_i32_1 = arith.constant 0 : i32
    return %c0_i32, %c0_i32_0 : i32, i32
  }
}

</mosaic_0001>

<llo_original>
// kernel: tardis_sequence.1
$region0: #{tardis_sequence.1}
  #allocation0 [shape = 'u32[]', space=smem, size = 0x4, offset = 0x4, fixed_abs, tag = 'smem constant byte address 0x4 - core index']
  #allocation1 [shape = 'u32[144,128]{1,0:T(1,128)}', space=vmem, size = 0x12000, scoped, tag = 'internal scratch']
  #allocation2 [shape = 'f32[8,128]{1,0:T(8,128)}', space=vmem, size = 0x1000, scoped, tag = 'scratch operand']
  #allocation3 [shape = 'f32[8,128]{1,0:T(8,128)}', space=vmem, size = 0x1000, scoped, tag = 'scratch operand']
  %s0 = inlined_call_operand.hbm [shape: f32[12,8,128], index: 0, kind: input, shape index: {}]
  %s1 = inlined_call_operand.hbm [shape: f32[8,128], index: 1, kind: input, shape index: {}]
  %s2 = inlined_call_operand.hbm [shape: f32[8,128], index: 2, kind: input, shape index: {}]
  %s3 = inlined_call_operand.hbm [shape: f32[648,128], index: 3, kind: input, shape index: {}]
  %s4 = inlined_call_operand.hbm [shape: f32[12,8,128], index: 4, kind: output, shape index: {0}]
  %s5 = inlined_call_operand.vmem [shape: f32[8,128], index: 5, kind: output, shape index: {1}]
  %s6 = inlined_call_operand.vmem [shape: f32[8,128], index: 6, kind: output, shape index: {2}]
  %7 = xla_tuple %s4, %s5, %s6
  %s8 = sld [smem:[#allocation0]]
  $region89: #{tardis_sequence.1} parent=0
    _
  %s10 = ssub.s32 1, %s8
  %s11 = scalar_select 0, %s10, %s8
  $region1: #{tardis_sequence.1} parent=0
    #allocation4 [shape = 'u8[8192]{0}', space=vmem, size = 0x2000, scoped, tag = 'input window, operand 0']
    #allocation5 [shape = 's32[2]{0}', space=sflag, size = 0x8, scoped, tag = 'scoped memory for tardis_sequence.1']
    #allocation6 [shape = 's32[2]{0}', space=sflag, size = 0x8, scoped, tag = 'scoped memory for tardis_sequence.1']
    #allocation7 [shape = 'u8[4096]{0}', space=vmem, size = 0x1000, scoped, tag = 'input window, operand 1, single buffered']
    #allocation8 [shape = 's32[1]{0}', space=sflag, size = 0x4, scoped, tag = 'scoped memory for tardis_sequence.1']
    #allocation9 [shape = 'u8[4096]{0}', space=vmem, size = 0x1000, scoped, tag = 'input window, operand 2, single buffered']
    #allocation10 [shape = 'u8[331776]{0}', space=vmem, size = 0x51000, scoped, tag = 'input window, operand 3, single buffered']
    #allocation11 [shape = 's32[1]{0}', space=sflag, size = 0x4, scoped, tag = 'scoped memory for tardis_sequence.1']
    #allocation12 [shape = 'u8[8192]{0}', space=vmem, size = 0x2000, scoped, tag = 'output window, operand 0']
    %12 = vsyncpa [#allocation5], 0
    %s13 = scalar_lea.sflag [#allocation5], 1
    %14 = vsyncpa %s13, 0
    %15 = vsyncpa [#allocation8], 0
    %16 = vsyncpa [#allocation11], 0
    %17 = vsyncpa [#allocation6], 0
    %s18 = scalar_lea.sflag [#allocation6], 1
    %19 = vsyncpa %s18, 0
    loop: start=0, step=1, limit=14
    $region2: #{tardis_sequence.1} parent=1 // loop_pre_header
      _
    $region3: #{tardis_sequence.1} parent=1 // loop_header
      %s21 = sphi 0, %s25
      %p22 = scmp.ge.s32.totalorder %s21, 14
      %s31 = sphi 0, %s33
      %s34 = sphi 0, %s31
      %s35 = sphi 0, %s34
      %s51 = sphi 0, %s35
      %s55 = sphi 0, %s55
      %s57 = sphi 0, %s55
      %s58 = sphi 0, %s57
      %s72 = sphi 0, %s58
      %s76 = sphi 0, %s76
      %s78 = sphi 0, %s76
      %s79 = sphi 0, %s78
      %s93 = sphi 0, %s79
      %s97 = sphi 0, %s97
      %s99 = sphi 0, %s97
      %s100 = sphi 0, %s99
      %s114 = sphi 0, %s100
      %s120 = sphi 0, %s122
      %s123 = sphi 0, %s120
      %s124 = sphi 0, %s123
      %s140 = sphi 0, %s124
      %s144 = sphi 0, %s144
      %s146 = sphi 0, %s144
      %s147 = sphi 0, %s146
      %s161 = sphi 0, %s147
      %s165 = sphi 0, %s165
      %s167 = sphi 0, %s165
      %s168 = sphi 0, %s167
      %s182 = sphi 0, %s168
    $region4: #{tardis_sequence.1} parent=1 // loop_header_branch
      %24 = sbr.rel (%p22) target = $region8
    $region5: #{tardis_sequence.1} parent=1 // loop_body
      %s26 = ssub.s32 %s21, 1
      %s27 = ssub.s32 %s21, 2
      %s28 = sadd.s32 %s21, 1
      %s29 = ssub.s32 %s21, %s28
      %p30 = scmp.eq.s32.totalorder %s29, 0
      %s32 = sadd.s32 %s31, 1
      %s33 = scalar_select %p30, %s31, %s32
      %p36 = pneg %p30
      %p37 = scmp.eq.s32.totalorder %s21, 11
      %p38 = por %p36, %p37
      %p39 = scmp.ne.s32.totalorder %s31, %s34
      %p40 = scmp.eq.s32.totalorder %s21, 0
      %p41 = por %p39, %p40
      %p42 = scmp.ne.s32.totalorder %s31, %s34
      %p43 = scmp.eq.s32.totalorder %s26, 11
      %p44 = por %p42, %p43
      %p45 = scmp.ne.s32.totalorder %s34, %s35
      %p46 = scmp.eq.s32.totalorder %s26, 0
      %p47 = por %p45, %p46
      %p48 = scmp.ne.s32.totalorder %s34, %s35
      %p49 = scmp.eq.s32.totalorder %s27, 11
      %p50 = por %p48, %p49
      %p52 = scmp.ne.s32.totalorder %s35, %s51
      %p53 = scmp.eq.s32.totalorder %s27, 0
      %p54 = por %p52, %p53
      %s56 = sadd.s32 %s55, 1
      %p59 = scmp.eq.s32.totalorder %s21, 11
      %p60 = scmp.ne.s32.totalorder %s55, %s57
      %p61 = scmp.eq.s32.totalorder %s21, 0
      %p62 = por %p60, %p61
      %p63 = scmp.ne.s32.totalorder %s55, %s57
      %p64 = scmp.eq.s32.totalorder %s26, 11
      %p65 = por %p63, %p64
      %p66 = scmp.ne.s32.totalorder %s57, %s58
      %p67 = scmp.eq.s32.totalorder %s26, 0
      %p68 = por %p66, %p67
      %p69 = scmp.ne.s32.totalorder %s57, %s58
      %p70 = scmp.eq.s32.totalorder %s27, 11
      %p71 = por %p69, %p70
      %p73 = scmp.ne.s32.totalorder %s58, %s72
      %p74 = scmp.eq.s32.totalorder %s27, 0
      %p75 = por %p73, %p74
      %s77 = sadd.s32 %s76, 1
      %p80 = scmp.eq.s32.totalorder %s21, 11
      %p81 = scmp.ne.s32.totalorder %s76, %s78
      %p82 = scmp.eq.s32.totalorder %s21, 0
      %p83 = por %p81, %p82
      %p84 = scmp.ne.s32.totalorder %s76, %s78
      %p85 = scmp.eq.s32.totalorder %s26, 11
      %p86 = por %p84, %p85
      %p87 = scmp.ne.s32.totalorder %s78, %s79
      %p88 = scmp.eq.s32.totalorder %s26, 0
      %p89 = por %p87, %p88
      %p90 = scmp.ne.s32.totalorder %s78, %s79
      %p91 = scmp.eq.s32.totalorder %s27, 11
      %p92 = por %p90, %p91
      %p94 = scmp.ne.s32.totalorder %s79, %s93
      %p95 = scmp.eq.s32.totalorder %s27, 0
      %p96 = por %p94, %p95
      %s98 = sadd.s32 %s97, 1
      %p101 = scmp.eq.s32.totalorder %s21, 11
      %p102 = scmp.ne.s32.totalorder %s97, %s99
      %p103 = scmp.eq.s32.totalorder %s21, 0
      %p104 = por %p102, %p103
      %p105 = scmp.ne.s32.totalorder %s97, %s99
      %p106 = scmp.eq.s32.totalorder %s26, 11
      %p107 = por %p105, %p106
      %p108 = scmp.ne.s32.totalorder %s99, %s100
      %p109 = scmp.eq.s32.totalorder %s26, 0
      %p110 = por %p108, %p109
      %p111 = scmp.ne.s32.totalorder %s99, %s100
      %p112 = scmp.eq.s32.totalorder %s27, 11
      %p113 = por %p111, %p112
      %p115 = scmp.ne.s32.totalorder %s100, %s114
      %p116 = scmp.eq.s32.totalorder %s27, 0
      %p117 = por %p115, %p116
      %s118 = ssub.s32 %s21, %s28
      %p119 = scmp.eq.s32.totalorder %s118, 0
      %s121 = sadd.s32 %s120, 1
      %s122 = scalar_select %p119, %s120, %s121
      %p125 = pneg %p119
      %p126 = scmp.eq.s32.totalorder %s21, 11
      %p127 = por %p125, %p126
      %p128 = scmp.ne.s32.totalorder %s120, %s123
      %p129 = scmp.eq.s32.totalorder %s21, 0
      %p130 = por %p128, %p129
      %p131 = scmp.ne.s32.totalorder %s120, %s123
      %p132 = scmp.eq.s32.totalorder %s26, 11
      %p133 = por %p131, %p132
      %p134 = scmp.ne.s32.totalorder %s123, %s124
      %p135 = scmp.eq.s32.totalorder %s26, 0
      %p136 = por %p134, %p135
      %p137 = scmp.ne.s32.totalorder %s123, %s124
      %p138 = scmp.eq.s32.totalorder %s27, 11
      %p139 = por %p137, %p138
      %p141 = scmp.ne.s32.totalorder %s124, %s140
      %p142 = scmp.eq.s32.totalorder %s27, 0
      %p143 = por %p141, %p142
      %s145 = sadd.s32 %s144, 1
      %p148 = scmp.eq.s32.totalorder %s21, 11
      %p149 = scmp.ne.s32.totalorder %s144, %s146
      %p150 = scmp.eq.s32.totalorder %s21, 0
      %p151 = por %p149, %p150
      %p152 = scmp.ne.s32.totalorder %s144, %s146
      %p153 = scmp.eq.s32.totalorder %s26, 11
      %p154 = por %p152, %p153
      %p155 = scmp.ne.s32.totalorder %s146, %s147
      %p156 = scmp.eq.s32.totalorder %s26, 0
      %p157 = por %p155, %p156
      %p158 = scmp.ne.s32.totalorder %s146, %s147
      %p159 = scmp.eq.s32.totalorder %s27, 11
      %p160 = por %p158, %p159
      %p162 = scmp.ne.s32.totalorder %s147, %s161
      %p163 = scmp.eq.s32.totalorder %s27, 0
      %p164 = por %p162, %p163
      %s166 = sadd.s32 %s165, 1
      %p169 = scmp.eq.s32.totalorder %s21, 11
      %p170 = scmp.ne.s32.totalorder %s165, %s167
      %p171 = scmp.eq.s32.totalorder %s21, 0
      %p172 = por %p170, %p171
      %p173 = scmp.ne.s32.totalorder %s165, %s167
      %p174 = scmp.eq.s32.totalorder %s26, 11
      %p175 = por %p173, %p174
      %p176 = scmp.ne.s32.totalorder %s167, %s168
      %p177 = scmp.eq.s32.totalorder %s26, 0
      %p178 = por %p176, %p177
      %p179 = scmp.ne.s32.totalorder %s167, %s168
      %p180 = scmp.eq.s32.totalorder %s27, 11
      %p181 = por %p179, %p180
      %p183 = scmp.ne.s32.totalorder %s168, %s182
      %p184 = scmp.eq.s32.totalorder %s27, 0
      %p185 = por %p183, %p184
      %p186 = scmp.le.s32.totalorder 1, %s21
      %p187 = scmp.lt.s32.totalorder %s21, 13
      %p188 = pnand %p186, %p187
      %p189 = pneg %p188
      // Predicated region
      $region9: #{tardis_sequence.1} parent=5 // pred_check
        _
      $region10: #{tardis_sequence.1} parent=5 // pred_check_branch
        %191 = sbr.rel (%p188) target = $region12
      $region11: #{tardis_sequence.1} parent=5 // pred_region
        %s192 = ssub.s32 %s21, 1
        // Predicated region
        $region13: #{tardis_sequence.1} parent=11 // pred_check
          %p193 = pneg %p68
        $region14: #{tardis_sequence.1} parent=11 // pred_check_branch
          %195 = sbr.rel (%p193) target = $region16
        $region15: #{tardis_sequence.1} parent=11 // pred_region
          %s197 = ssub.s32 128, 128
          %198 = vsyncadd [#allocation8], %s197
          %s200 = sshll.u32 [#allocation7], 4
          %s201 = int_to_ptr.vmem [resolvable:$true] %s200
          %203 = dma.hbm_to_vmem [thread:$0]  %s1, 128, %s201, [#allocation8]
        $region16: #{tardis_sequence.1} parent=11 // pred_fallthru
          _
        // Predicated region
        $region17: #{tardis_sequence.1} parent=11 // pred_check
          %p204 = pneg %p89
        $region18: #{tardis_sequence.1} parent=11 // pred_check_branch
          %206 = sbr.rel (%p204) target = $region20
        $region19: #{tardis_sequence.1} parent=11 // pred_region
          %s208 = ssub.s32 128, 128
          %209 = vsyncadd [#allocation8], %s208
          %s211 = sshll.u32 [#allocation9], 4
          %s212 = int_to_ptr.vmem [resolvable:$true] %s211
          %214 = dma.hbm_to_vmem [thread:$0]  %s2, 128, %s212, [#allocation8]
        $region20: #{tardis_sequence.1} parent=11 // pred_fallthru
          _
        // Predicated region
        $region21: #{tardis_sequence.1} parent=11 // pred_check
          %p215 = pneg %p110
        $region22: #{tardis_sequence.1} parent=11 // pred_check_branch
          %217 = sbr.rel (%p215) target = $region24
        $region23: #{tardis_sequence.1} parent=11 // pred_region
          %s219 = ssub.s32 10368, 10368
          %220 = vsyncadd [#allocation11], %s219
          %s221 = sshll.u32 [#allocation10], 4
          %s222 = int_to_ptr.vmem [resolvable:$true] %s221
          %227 = dma.hbm_to_vmem [thread:$0]  %s3, 10368, %s222, [#allocation11], 128, 128, 8
        $region24: #{tardis_sequence.1} parent=11 // pred_fallthru
          _
      $region12: #{tardis_sequence.1} parent=5 // pred_fallthru
        _
      %p228 = scmp.lt.s32.totalorder %s21, 12
      // Predicated region
      $region25: #{tardis_sequence.1} parent=5 // pred_check
        %p229 = pneg %p228
      $region26: #{tardis_sequence.1} parent=5 // pred_check_branch
        %231 = sbr.rel (%p229) target = $region28
      $region27: #{tardis_sequence.1} parent=5 // pred_region
        // Predicated region
        $region29: #{tardis_sequence.1} parent=27 // pred_check
          %p232 = pneg %p41
        $region30: #{tardis_sequence.1} parent=27 // pred_check_branch
          %234 = sbr.rel (%p232) target = $region32
        $region31: #{tardis_sequence.1} parent=27 // pred_region
          %s235 = sand.u32 %s31, 1
          %s236 = scalar_lea.sflag [#allocation5], %s235
          %s237 = sand.u32 %s31, 1
          %s238 = smul.addr %s237, 8
          %s239 = scalar_lea.vmem [#allocation4], %s238
          %s241 = ssub.s32 128, 128
          %242 = vsyncadd %s236, %s241
          %s243 = smul.addr %s21, 128
          %s244 = scalar_lea.hbm %s0, %s243
          %s246 = sshll.u32 %s239, 4
          %s247 = int_to_ptr.vmem [resolvable:$true] %s246
          %249 = dma.hbm_to_vmem [thread:$0]  %s244, 128, %s247, %s236
        $region32: #{tardis_sequence.1} parent=27 // pred_fallthru
          _
      $region28: #{tardis_sequence.1} parent=5 // pred_fallthru
        _
      %p250 = scmp.le.s32.totalorder 1, %s21
      %p251 = scmp.lt.s32.totalorder %s21, 13
      %p252 = pnand %p250, %p251
      %p253 = pneg %p252
      // Predicated region
      $region33: #{tardis_sequence.1} parent=5 // pred_check
        _
      $region34: #{tardis_sequence.1} parent=5 // pred_check_branch
        %255 = sbr.rel (%p252) target = $region36
      $region35: #{tardis_sequence.1} parent=5 // pred_region
        %s256 = ssub.s32 %s21, 1
        %s257 = sand.u32 %s34, 1
        %s258 = scalar_lea.sflag [#allocation5], %s257
        %s259 = sand.u32 %s34, 1
        %s260 = smul.addr %s259, 8
        %s261 = scalar_lea.vmem [#allocation4], %s260
        // Predicated region
        $region37: #{tardis_sequence.1} parent=35 // pred_check
          %p262 = pneg %p47
        $region38: #{tardis_sequence.1} parent=35 // pred_check_branch
          %264 = sbr.rel (%p262) target = $region40
        $region39: #{tardis_sequence.1} parent=35 // pred_region
          %265 = dma.done %s258, 128
        $region40: #{tardis_sequence.1} parent=35 // pred_fallthru
          _
        // Predicated region
        $region41: #{tardis_sequence.1} parent=35 // pred_check
          %p266 = pneg %p68
        $region42: #{tardis_sequence.1} parent=35 // pred_check_branch
          %268 = sbr.rel (%p266) target = $region44
        $region43: #{tardis_sequence.1} parent=35 // pred_region
          %269 = dma.done [#allocation8], 128
        $region44: #{tardis_sequence.1} parent=35 // pred_fallthru
          _
        // Predicated region
        $region45: #{tardis_sequence.1} parent=35 // pred_check
          %p270 = pneg %p89
        $region46: #{tardis_sequence.1} parent=35 // pred_check_branch
          %272 = sbr.rel (%p270) target = $region48
        $region47: #{tardis_sequence.1} parent=35 // pred_region
          %273 = dma.done [#allocation8], 128
        $region48: #{tardis_sequence.1} parent=35 // pred_fallthru
          _
        // Predicated region
        $region49: #{tardis_sequence.1} parent=35 // pred_check
          %p274 = pneg %p110
        $region50: #{tardis_sequence.1} parent=35 // pred_check_branch
          %276 = sbr.rel (%p274) target = $region52
        $region51: #{tardis_sequence.1} parent=35 // pred_region
          %277 = dma.done [#allocation11], 10368
        $region52: #{tardis_sequence.1} parent=35 // pred_fallthru
          _
        %s278 = sand.u32 %s34, 1
        %s279 = scalar_lea.sflag [#allocation5], %s278
        %s280 = sand.u32 %s34, 1
        %s281 = smul.addr %s280, 8
        %s282 = scalar_lea.vmem [#allocation4], %s281
        %p283 = pneg %p47
        %p284 = pneg %p44
        %p285 = pneg %p68
        %p286 = pneg %p65
        %p287 = pneg %p89
        %p288 = pneg %p86
        %p289 = pneg %p110
        %p290 = pneg %p107
        %p291 = pneg %p136
        %p292 = pneg %p133
        %s293 = sand.u32 %s123, 1
        %s294 = scalar_lea.sflag [#allocation6], %s293
        %s295 = sand.u32 %s123, 1
        %s296 = smul.addr %s295, 8
        %s297 = scalar_lea.vmem [#allocation12], %s296
        %p298 = pneg %p157
        %p299 = pneg %p154
        %p300 = pneg %p178
        %p301 = pneg %p175
        %p302 = scmp.eq.s32.totalorder %s26, 0
        // Predicated region
        $region53: #{tardis_sequence.1} parent=35 // pred_check
          %p303 = pneg %p302
        $region54: #{tardis_sequence.1} parent=35 // pred_check_branch
          %305 = sbr.rel (%p303) target = $region56
        $region55: #{tardis_sequence.1} parent=35 // pred_region
          %v306 = vld [vmem:[#allocation7] sm:$0xff]
          %307 = vst [vmem:[#allocation2] sm:$0xff] %v306
          %v308 = vld [vmem:[#allocation9] sm:$0xff]
          %309 = vst [vmem:[#allocation3] sm:$0xff] %v308
        $region56: #{tardis_sequence.1} parent=35 // pred_fallthru
          _
        %v310 = vld [vmem:[%s261] sm:$0xff]
        %v311 = vld [vmem:[#allocation2] sm:$0xff]
        %v312 = vld [vmem:[#allocation3] sm:$0xff]
        %v313 = vmul.f32 %v311, %v311
        %315 = vrot.lane.b32.xlu0 %v313, 64
        %v316 = vpop.permute.xlu0 %315
        %vm318 = vcmask 64512
        %v319 = vsel %vm318, %v316, 0.0
        %320 = vadd.xlane.f32.xlu0 %v319
        %v321 = vpop.xlane.xlu0 %320
        %v322 = vmax.f32 %v321, 1e-24
        %v323 = vrsqrt.pop %v322
        %v324 = vmul.f32 %v311, %v323
        %326 = vrot.lane.b32.xlu0 %v311, 112
        %v327 = vpop.permute.xlu0 %326
        %330 = vrot.lane.b32.xlu0 %v324, 112
        %v331 = vpop.permute.xlu0 %330
        %vm333 = vcmask 130048
        %v334 = vsel %vm333, %v310, %v327
        %vm335 = vcmask 392192
        %v336 = vsel %vm335, %v334, %v331
        %vm337 = vcmask 457728
        %v338 = vsel %vm337, %v336, 0.0
        %v339 = vld [vmem:[#allocation10 + $0x90] sm:$0xff]
        %v340 = vld [vmem:[#allocation10 + $0x98] sm:$0xff]
        %v341 = vld [vmem:[#allocation10 + $0xa0] sm:$0xff]
        %v342 = vld [vmem:[#allocation10 + $0xa8] sm:$0xff]
        %v343 = vld [vmem:[#allocation10 + $0xb0] sm:$0xff]
        %v344 = vld [vmem:[#allocation10 + $0xb8] sm:$0xff]
        %v345 = vld [vmem:[#allocation10 + $0xc0] sm:$0xff]
        %v346 = vld [vmem:[#allocation10 + $0xc8] sm:$0xff]
        %v347 = vld [vmem:[#allocation10 + $0xd8] sm:$0xff]
        %v348 = vld [vmem:[#allocation10 + $0xe0] sm:$0xff]
        %v349 = vld [vmem:[#allocation10 + $0xe8] sm:$0xff]
        %v350 = vld [vmem:[#allocation10 + $0xf0] sm:$0xff]
        %v351 = vld [vmem:[#allocation10 + $0xf8] sm:$0xff]
        %v352 = vld [vmem:[#allocation10 + $0x100] sm:$0xff]
        %v353 = vld [vmem:[#allocation10 + $0x108] sm:$0xff]
        %v354 = vld [vmem:[#allocation10 + $0x110] sm:$0xff]
        %v355 = vld [vmem:[#allocation10 + $0x118] sm:$0xff]
        %v356 = vld [vmem:[#allocation10 + $0x120] sm:$0xff]
        %v357 = vld [vmem:[#allocation10 + $0x128] sm:$0xff]
        %v358 = vld [vmem:[#allocation10 + $0x130] sm:$0xff]
        %v359 = vld [vmem:[#allocation10 + $0x138] sm:$0xff]
        %v360 = vld [vmem:[#allocation10 + $0x140] sm:$0xff]
        %v361 = vld [vmem:[#allocation10 + $0x148] sm:$0xff]
        %v362 = vld [vmem:[#allocation10 + $0x150] sm:$0xff]
        %363 = vmatprep.subr.mxu0 0.0
        %364 = vmatpush1.msra.mxu0 %v347
        %365 = vmatprep.subr.mxu0 0.0
        %366 = vmatpush1.msra.mxu0 %v348
        %367 = vmatprep.subr.mxu0 0.0
        %368 = vmatpush1.msra.mxu0 %v349
        %369 = vmatprep.subr.mxu0 0.0
        %370 = vmatpush1.msra.mxu0 %v350
        %371 = vmatprep.subr.mxu0 0.0
        %372 = vmatpush1.msra.mxu0 %v351
        %373 = vmatprep.subr.mxu0 0.0
        %374 = vmatpush1.msra.mxu0 %v352
        %375 = vmatprep.subr.mxu0 0.0
        %376 = vmatpush1.msra.mxu0 %v353
        %377 = vmatprep.subr.mxu0 0.0
        %378 = vmatpush1.msra.mxu0 %v354
        %379 = vmatprep.subr.mxu0 0.0
        %380 = vmatpush1.msra.mxu0 %v355
        %381 = vmatprep.subr.mxu0 0.0
        %382 = vmatpush1.msra.mxu0 %v356
        %383 = vmatprep.subr.mxu0 0.0
        %384 = vmatpush1.msra.mxu0 %v357
        %385 = vmatprep.subr.mxu0 0.0
        %386 = vmatpush1.msra.mxu0 %v358
        %387 = vmatprep.subr.mxu0 0.0
        %388 = vmatpush1.msra.mxu0 %v359
        %389 = vmatprep.subr.mxu0 0.0
        %390 = vmatpush1.msra.mxu0 %v360
        %391 = vmatprep.subr.mxu0 0.0
        %392 = vmatpush1.msra.mxu0 %v361
        %393 = vmatprep.subr.mxu0 0.0
        %394 = vmatpush1.msra.mxu0 %v362
        %395 = vmatprep.subr.mxu0 0.0
        %396 = vmatpush1.msra.mxu0 0.0
        %397 = vmatprep.subr.mxu0 0.0
        %398 = vmatpush1.msra.mxu0 0.0
        %399 = vmatprep.subr.mxu0 0.0
        %400 = vmatpush1.msra.mxu0 0.0
        %401 = vmatprep.subr.mxu0 0.0
        %402 = vmatpush1.msra.mxu0 0.0
        %403 = vmatprep.subr.mxu0 0.0
        %404 = vmatpush1.msra.mxu0 0.0
        %405 = vmatprep.subr.mxu0 0.0
        %406 = vmatpush1.msra.mxu0 0.0
        %407 = vmatprep.subr.mxu0 0.0
        %408 = vmatpush1.msra.mxu0 0.0
        %409 = vmatprep.subr.mxu0 0.0
        %410 = vmatpush1.msra.mxu0 0.0
        %411 = vmatprep.subr.mxu0 0.0
        %412 = vmatpush1.msra.mxu0 0.0
        %413 = vmatprep.subr.mxu0 0.0
        %414 = vmatpush1.msra.mxu0 0.0
        %415 = vmatprep.subr.mxu0 0.0
        %416 = vmatpush1.msra.mxu0 0.0
        %417 = vmatprep.subr.mxu0 0.0
        %418 = vmatpush1.msra.mxu0 0.0
        %419 = vmatprep.subr.mxu0 0.0
        %420 = vmatpush1.msra.mxu0 0.0
        %421 = vmatprep.subr.mxu0 0.0
        %422 = vmatpush1.msra.mxu0 0.0
        %423 = vmatprep.subr.mxu0 0.0
        %424 = vmatpush1.msra.mxu0 0.0
        %425 = vmatprep.subr.mxu0 0.0
        %426 = vmatpush1.msra.mxu0 0.0
        %427 = vmatprep.mubr.f32.mxu0 0.0
        %428 = vmatmul.mubr.f32.gmra.mrb[0].mxu0 %v312
        %v429 = vpop.f32.mrb[0].mxu0
        %v430 = vadd.f32 0.0, %v429
        %v431 = vpop.f32.mrb[0].mxu0
        %432 = vdwg.mxu0
        %vm433 = vcmask 523264
        %v435 = vsel %vm433, %v338, 0
        %437 = vmatprep.subr.mxu0 0.0
        %438 = vmatpush1.msra.mxu0 %v339
        %439 = vmatprep.subr.mxu0 0.0
        %440 = vmatpush1.msra.mxu0 %v340
        %441 = vmatprep.subr.mxu0 0.0
        %442 = vmatpush1.msra.mxu0 %v341
        %443 = vmatprep.subr.mxu0 0.0
        %444 = vmatpush1.msra.mxu0 %v342
        %445 = vmatprep.subr.mxu0 0.0
        %446 = vmatpush1.msra.mxu0 %v343
        %447 = vmatprep.subr.mxu0 0.0
        %448 = vmatpush1.msra.mxu0 %v344
        %449 = vmatprep.subr.mxu0 0.0
        %450 = vmatpush1.msra.mxu0 %v345
        %451 = vmatprep.subr.mxu0 0.0
        %452 = vmatpush1.msra.mxu0 %v346
        %453 = vmatprep.subr.mxu0 0.0
        %454 = vmatpush1.msra.mxu0 0.0
        %455 = vmatprep.subr.mxu0 0.0
        %456 = vmatpush1.msra.mxu0 0.0
        %457 = vmatprep.subr.mxu0 0.0
        %458 = vmatpush1.msra.mxu0 0.0
        %459 = vmatprep.subr.mxu0 0.0
        %460 = vmatpush1.msra.mxu0 0.0
        %461 = vmatprep.subr.mxu0 0.0
        %462 = vmatpush1.msra.mxu0 0.0
        %463 = vmatprep.subr.mxu0 0.0
        %464 = vmatpush1.msra.mxu0 0.0
        %465 = vmatprep.subr.mxu0 0.0
        %466 = vmatpush1.msra.mxu0 0.0
        %467 = vmatprep.subr.mxu0 0.0
        %468 = vmatpush1.msra.mxu0 0.0
        %469 = vmatprep.subr.mxu0 0.0
        %470 = vmatpush1.msra.mxu0 0.0
        %471 = vmatprep.subr.mxu0 0.0
        %472 = vmatpush1.msra.mxu0 0.0
        %473 = vmatprep.subr.mxu0 0.0
        %474 = vmatpush1.msra.mxu0 0.0
        %475 = vmatprep.subr.mxu0 0.0
        %476 = vmatpush1.msra.mxu0 0.0
        %477 = vmatprep.subr.mxu0 0.0
        %478 = vmatpush1.msra.mxu0 0.0
        %479 = vmatprep.subr.mxu0 0.0
        %480 = vmatpush1.msra.mxu0 0.0
        %481 = vmatprep.subr.mxu0 0.0
        %482 = vmatpush1.msra.mxu0 0.0
        %483 = vmatprep.subr.mxu0 0.0
        %484 = vmatpush1.msra.mxu0 0.0
        %485 = vmatprep.subr.mxu0 0.0
        %486 = vmatpush1.msra.mxu0 0.0
        %487 = vmatprep.subr.mxu0 0.0
        %488 = vmatpush1.msra.mxu0 0.0
        %489 = vmatprep.subr.mxu0 0.0
        %490 = vmatpush1.msra.mxu0 0.0
        %491 = vmatprep.subr.mxu0 0.0
        %492 = vmatpush1.msra.mxu0 0.0
        %493 = vmatprep.subr.mxu0 0.0
        %494 = vmatpush1.msra.mxu0 0.0
        %495 = vmatprep.subr.mxu0 0.0
        %496 = vmatpush1.msra.mxu0 0.0
        %497 = vmatprep.subr.mxu0 0.0
        %498 = vmatpush1.msra.mxu0 0.0
        %499 = vmatprep.subr.mxu0 0.0
        %500 = vmatpush1.msra.mxu0 0.0
        %501 = vmatprep.mubr.f32.mxu0 0.0
        %502 = vmatmul.mubr.f32.gmra.mrb[0].mxu0 %v435
        %v503 = vpop.f32.mrb[0].mxu0
        %v504 = vadd.f32 %v430, %v503
        %v505 = vpop.f32.mrb[0].mxu0
        %506 = vdwg.mxu0
        %v507 = vld [vmem:[#allocation10 + $0xd0] sm:$0x1]
        %v508 = vlaneseq
        %v509 = vshrl.u32 %v508, 7
        %v510 = vsub.s32 0, %v509
        %v511 = vrot.slane %v507, %v510
        %v512 = vadd.f32 %v504, %v511
        %v513 = vtanh.pop %v512
        %v514 = vld [vmem:[#allocation10 + $0x158] sm:$0xff]
        %v515 = vld [vmem:[#allocation10 + $0x160] sm:$0xff]
        %v516 = vld [vmem:[#allocation10 + $0x168] sm:$0xff]
        %v517 = vld [vmem:[#allocation10 + $0x170] sm:$0xff]
        %v518 = vld [vmem:[#allocation10 + $0x178] sm:$0xff]
        %v519 = vld [vmem:[#allocation10 + $0x180] sm:$0xff]
        %v520 = vld [vmem:[#allocation10 + $0x188] sm:$0xff]
        %v521 = vld [vmem:[#allocation10 + $0x190] sm:$0xff]
        %v522 = vld [vmem:[#allocation10 + $0x198] sm:$0xff]
        %v523 = vld [vmem:[#allocation10 + $0x1a0] sm:$0xff]
        %v524 = vld [vmem:[#allocation10 + $0x1a8] sm:$0xff]
        %v525 = vld [vmem:[#allocation10 + $0x1b0] sm:$0xff]
        %v526 = vld [vmem:[#allocation10 + $0x1b8] sm:$0xff]
        %v527 = vld [vmem:[#allocation10 + $0x1c0] sm:$0xff]
        %v528 = vld [vmem:[#allocation10 + $0x1c8] sm:$0xff]
        %v529 = vld [vmem:[#allocation10 + $0x1d0] sm:$0xff]
        %530 = vmatprep.subr.mxu0 0.0
        %531 = vmatpush1.msra.mxu0 %v514
        %532 = vmatprep.subr.mxu0 0.0
        %533 = vmatpush1.msra.mxu0 %v515
        %534 = vmatprep.subr.mxu0 0.0
        %535 = vmatpush1.msra.mxu0 %v516
        %536 = vmatprep.subr.mxu0 0.0
        %537 = vmatpush1.msra.mxu0 %v517
        %538 = vmatprep.subr.mxu0 0.0
        %539 = vmatpush1.msra.mxu0 %v518
        %540 = vmatprep.subr.mxu0 0.0
        %541 = vmatpush1.msra.mxu0 %v519
        %542 = vmatprep.subr.mxu0 0.0
        %543 = vmatpush1.msra.mxu0 %v520
        %544 = vmatprep.subr.mxu0 0.0
        %545 = vmatpush1.msra.mxu0 %v521
        %546 = vmatprep.subr.mxu0 0.0
        %547 = vmatpush1.msra.mxu0 %v522
        %548 = vmatprep.subr.mxu0 0.0
        %549 = vmatpush1.msra.mxu0 %v523
        %550 = vmatprep.subr.mxu0 0.0
        %551 = vmatpush1.msra.mxu0 %v524
        %552 = vmatprep.subr.mxu0 0.0
        %553 = vmatpush1.msra.mxu0 %v525
        %554 = vmatprep.subr.mxu0 0.0
        %555 = vmatpush1.msra.mxu0 %v526
        %556 = vmatprep.subr.mxu0 0.0
        %557 = vmatpush1.msra.mxu0 %v527
        %558 = vmatprep.subr.mxu0 0.0
        %559 = vmatpush1.msra.mxu0 %v528
        %560 = vmatprep.subr.mxu0 0.0
        %561 = vmatpush1.msra.mxu0 %v529
        %562 = vmatprep.subr.mxu0 0.0
        %563 = vmatpush1.msra.mxu0 0.0
        %564 = vmatprep.subr.mxu0 0.0
        %565 = vmatpush1.msra.mxu0 0.0
        %566 = vmatprep.subr.mxu0 0.0
        %567 = vmatpush1.msra.mxu0 0.0
        %568 = vmatprep.subr.mxu0 0.0
        %569 = vmatpush1.msra.mxu0 0.0
        %570 = vmatprep.subr.mxu0 0.0
        %571 = vmatpush1.msra.mxu0 0.0
        %572 = vmatprep.subr.mxu0 0.0
        %573 = vmatpush1.msra.mxu0 0.0
        %574 = vmatprep.subr.mxu0 0.0
        %575 = vmatpush1.msra.mxu0 0.0
        %576 = vmatprep.subr.mxu0 0.0
        %577 = vmatpush1.msra.mxu0 0.0
        %578 = vmatprep.subr.mxu0 0.0
        %579 = vmatpush1.msra.mxu0 0.0
        %580 = vmatprep.subr.mxu0 0.0
        %581 = vmatpush1.msra.mxu0 0.0
        %582 = vmatprep.subr.mxu0 0.0
        %583 = vmatpush1.msra.mxu0 0.0
        %584 = vmatprep.subr.mxu0 0.0
        %585 = vmatpush1.msra.mxu0 0.0
        %586 = vmatprep.subr.mxu0 0.0
        %587 = vmatpush1.msra.mxu0 0.0
        %588 = vmatprep.subr.mxu0 0.0
        %589 = vmatpush1.msra.mxu0 0.0
        %590 = vmatprep.subr.mxu0 0.0
        %591 = vmatpush1.msra.mxu0 0.0
        %592 = vmatprep.subr.mxu0 0.0
        %593 = vmatpush1.msra.mxu0 0.0
        %594 = vmatprep.mubr.f32.mxu0 0.0
        %595 = vmatmul.mubr.f32.gmra.mrb[0].mxu0 %v513
        %v596 = vpop.f32.mrb[0].mxu0
        %v597 = vadd.f32 0.0, %v596
        %v598 = vpop.f32.mrb[0].mxu0
        %599 = vdwg.mxu0
        %v600 = vmul.f32 %v311, 100.0
        %602 = vrot.lane.b32.xlu0 %v600, 56
        %v603 = vpop.permute.xlu0 %602
        %v605 = vsub.f32 %v597, %v603
        %607 = vrot.lane.b32.xlu0 %v310, 112
        %v608 = vpop.permute.xlu0 %607
        %v610 = vadd.f32 %v605, %v608
        %v611 = vsel %vm318, %v610, -inf
        %612 = vmax.xlane.f32.xlu0 %v611
        %v613 = vpop.xlane.xlu0 %612
        %vm614 = vcmp.eq.f32.partialorder %v610, %v613
        %v615 = vsel %vm614, 1, 0
        %v616 = vcvt.s32.f32 %v615
        %v617 = vld [vmem:[#allocation10 + $0x1d8] sm:$0xff]
        %v619 = vsel %vm318, %v616, 0
        %621 = vmatprep.subr.mxu0 0.0
        %622 = vmatpush1.msra.mxu0 %v617
        %623 = vmatprep.subr.mxu0 0.0
        %624 = vmatpush1.msra.mxu0 0.0
        %625 = vmatprep.subr.mxu0 0.0
        %626 = vmatpush1.msra.mxu0 0.0
        %627 = vmatprep.subr.mxu0 0.0
        %628 = vmatpush1.msra.mxu0 0.0
        %629 = vmatprep.subr.mxu0 0.0
        %630 = vmatpush1.msra.mxu0 0.0
        %631 = vmatprep.subr.mxu0 0.0
        %632 = vmatpush1.msra.mxu0 0.0
        %633 = vmatprep.subr.mxu0 0.0
        %634 = vmatpush1.msra.mxu0 0.0
        %635 = vmatprep.subr.mxu0 0.0
        %636 = vmatpush1.msra.mxu0 0.0
        %637 = vmatprep.subr.mxu0 0.0
        %638 = vmatpush1.msra.mxu0 0.0
        %639 = vmatprep.subr.mxu0 0.0
        %640 = vmatpush1.msra.mxu0 0.0
        %641 = vmatprep.subr.mxu0 0.0
        %642 = vmatpush1.msra.mxu0 0.0
        %643 = vmatprep.subr.mxu0 0.0
        %644 = vmatpush1.msra.mxu0 0.0
        %645 = vmatprep.subr.mxu0 0.0
        %646 = vmatpush1.msra.mxu0 0.0
        %647 = vmatprep.subr.mxu0 0.0
        %648 = vmatpush1.msra.mxu0 0.0
        %649 = vmatprep.subr.mxu0 0.0
        %650 = vmatpush1.msra.mxu0 0.0
        %651 = vmatprep.subr.mxu0 0.0
        %652 = vmatpush1.msra.mxu0 0.0
        %653 = vmatprep.subr.mxu0 0.0
        %654 = vmatpush1.msra.mxu0 0.0
        %655 = vmatprep.subr.mxu0 0.0
        %656 = vmatpush1.msra.mxu0 0.0
        %657 = vmatprep.subr.mxu0 0.0
        %658 = vmatpush1.msra.mxu0 0.0
        %659 = vmatprep.subr.mxu0 0.0
        %660 = vmatpush1.msra.mxu0 0.0
        %661 = vmatprep.subr.mxu0 0.0
        %662 = vmatpush1.msra.mxu0 0.0
        %663 = vmatprep.subr.mxu0 0.0
        %664 = vmatpush1.msra.mxu0 0.0
        %665 = vmatprep.subr.mxu0 0.0
        %666 = vmatpush1.msra.mxu0 0.0
        %667 = vmatprep.subr.mxu0 0.0
        %668 = vmatpush1.msra.mxu0 0.0
        %669 = vmatprep.subr.mxu0 0.0
        %670 = vmatpush1.msra.mxu0 0.0
        %671 = vmatprep.subr.mxu0 0.0
        %672 = vmatpush1.msra.mxu0 0.0
        %673 = vmatprep.subr.mxu0 0.0
        %674 = vmatpush1.msra.mxu0 0.0
        %675 = vmatprep.subr.mxu0 0.0
        %676 = vmatpush1.msra.mxu0 0.0
        %677 = vmatprep.subr.mxu0 0.0
        %678 = vmatpush1.msra.mxu0 0.0
        %679 = vmatprep.subr.mxu0 0.0
        %680 = vmatpush1.msra.mxu0 0.0
        %681 = vmatprep.subr.mxu0 0.0
        %682 = vmatpush1.msra.mxu0 0.0
        %683 = vmatprep.subr.mxu0 0.0
        %684 = vmatpush1.msra.mxu0 0.0
        %685 = vmatprep.mubr.f32.mxu0 0.0
        %686 = vmatmul.mubr.f32.gmra.mrb[0].mxu0 %v619
        %v687 = vpop.f32.mrb[0].mxu0
        %v688 = vadd.f32 0.0, %v687
        %v689 = vpop.f32.mrb[0].mxu0
        %690 = vdwg.mxu0
        %v691 = vmul.f32 %v688, %v312
        %v692 = vld [vmem:[#allocation10 + $0x1e0] sm:$0xff]
        %v693 = vld [vmem:[#allocation10 + $0x1e8] sm:$0xff]
        %v694 = vld [vmem:[#allocation10 + $0x1f0] sm:$0xff]
        %v695 = vld [vmem:[#allocation10 + $0x1f8] sm:$0xff]
        %v696 = vld [vmem:[#allocation10 + $0x200] sm:$0xff]
        %v697 = vld [vmem:[#allocation10 + $0x208] sm:$0xff]
        %v698 = vld [vmem:[#allocation10 + $0x210] sm:$0xff]
        %v699 = vld [vmem:[#allocation10 + $0x218] sm:$0xff]
        %v700 = vld [vmem:[#allocation10 + $0x220] sm:$0xff]
        %v701 = vld [vmem:[#allocation10 + $0x228] sm:$0xff]
        %v702 = vld [vmem:[#allocation10 + $0x230] sm:$0xff]
        %v703 = vld [vmem:[#allocation10 + $0x238] sm:$0xff]
        %v704 = vld [vmem:[#allocation10 + $0x240] sm:$0xff]
        %v705 = vld [vmem:[#allocation10 + $0x248] sm:$0xff]
        %v706 = vld [vmem:[#allocation10 + $0x250] sm:$0xff]
        %v707 = vld [vmem:[#allocation10 + $0x258] sm:$0xff]
        %708 = vmatprep.subr.mxu0 0.0
        %709 = vmatpush1.msra.mxu0 %v692
        %710 = vmatprep.subr.mxu0 0.0
        %711 = vmatpush1.msra.mxu0 %v693
        %712 = vmatprep.subr.mxu0 0.0
        %713 = vmatpush1.msra.mxu0 %v694
        %714 = vmatprep.subr.mxu0 0.0
        %715 = vmatpush1.msra.mxu0 %v695
        %716 = vmatprep.subr.mxu0 0.0
        %717 = vmatpush1.msra.mxu0 %v696
        %718 = vmatprep.subr.mxu0 0.0
        %719 = vmatpush1.msra.mxu0 %v697
        %720 = vmatprep.subr.mxu0 0.0
        %721 = vmatpush1.msra.mxu0 %v698
        %722 = vmatprep.subr.mxu0 0.0
        %723 = vmatpush1.msra.mxu0 %v699
        %724 = vmatprep.subr.mxu0 0.0
        %725 = vmatpush1.msra.mxu0 %v700
        %726 = vmatprep.subr.mxu0 0.0
        %727 = vmatpush1.msra.mxu0 %v701
        %728 = vmatprep.subr.mxu0 0.0
        %729 = vmatpush1.msra.mxu0 %v702
        %730 = vmatprep.subr.mxu0 0.0
        %731 = vmatpush1.msra.mxu0 %v703
        %732 = vmatprep.subr.mxu0 0.0
        %733 = vmatpush1.msra.mxu0 %v704
        %734 = vmatprep.subr.mxu0 0.0
        %735 = vmatpush1.msra.mxu0 %v705
        %736 = vmatprep.subr.mxu0 0.0
        %737 = vmatpush1.msra.mxu0 %v706
        %738 = vmatprep.subr.mxu0 0.0
        %739 = vmatpush1.msra.mxu0 %v707
        %740 = vmatprep.subr.mxu0 0.0
        %741 = vmatpush1.msra.mxu0 0.0
        %742 = vmatprep.subr.mxu0 0.0
        %743 = vmatpush1.msra.mxu0 0.0
        %744 = vmatprep.subr.mxu0 0.0
        %745 = vmatpush1.msra.mxu0 0.0
        %746 = vmatprep.subr.mxu0 0.0
        %747 = vmatpush1.msra.mxu0 0.0
        %748 = vmatprep.subr.mxu0 0.0
        %749 = vmatpush1.msra.mxu0 0.0
        %750 = vmatprep.subr.mxu0 0.0
        %751 = vmatpush1.msra.mxu0 0.0
        %752 = vmatprep.subr.mxu0 0.0
        %753 = vmatpush1.msra.mxu0 0.0
        %754 = vmatprep.subr.mxu0 0.0
        %755 = vmatpush1.msra.mxu0 0.0
        %756 = vmatprep.subr.mxu0 0.0
        %757 = vmatpush1.msra.mxu0 0.0
        %758 = vmatprep.subr.mxu0 0.0
        %759 = vmatpush1.msra.mxu0 0.0
        %760 = vmatprep.subr.mxu0 0.0
        %761 = vmatpush1.msra.mxu0 0.0
        %762 = vmatprep.subr.mxu0 0.0
        %763 = vmatpush1.msra.mxu0 0.0
        %764 = vmatprep.subr.mxu0 0.0
        %765 = vmatpush1.msra.mxu0 0.0
        %766 = vmatprep.subr.mxu0 0.0
        %767 = vmatpush1.msra.mxu0 0.0
        %768 = vmatprep.subr.mxu0 0.0
        %769 = vmatpush1.msra.mxu0 0.0
        %770 = vmatprep.subr.mxu0 0.0
        %771 = vmatpush1.msra.mxu0 0.0
        %772 = vmatprep.mubr.f32.mxu0 0.0
        %773 = vmatmul.mubr.f32.gmra.mrb[0].mxu0 %v691
        %v774 = vpop.f32.mrb[0].mxu0
        %v775 = vadd.f32 0.0, %v774
        %v776 = vpop.f32.mrb[0].mxu0
        %777 = vdwg.mxu0
        %778 = vrot.lane.b32.xlu0 %v616, 64
        %v779 = vpop.permute.xlu0 %778
        %v781 = vadd.f32 %v311, %v779
        %782 = vrot.lane.b32.xlu0 %v311, 16
        %v783 = vpop.permute.xlu0 %782
        %786 = vrot.lane.b32.xlu0 %v775, 48
        %v787 = vpop.permute.xlu0 %786
        %v789 = vsel %vm333, %v310, %v783
        %v790 = vsel %vm335, %v789, %v787
        %v791 = vld [vmem:[#allocation10] sm:$0xff]
        %v792 = vld [vmem:[#allocation10 + $0x8] sm:$0xff]
        %v793 = vld [vmem:[#allocation10 + $0x10] sm:$0xff]
        %v794 = vld [vmem:[#allocation10 + $0x18] sm:$0xff]
        %v795 = vld [vmem:[#allocation10 + $0x20] sm:$0xff]
        %v796 = vld [vmem:[#allocation10 + $0x28] sm:$0xff]
        %v797 = vld [vmem:[#allocation10 + $0x30] sm:$0xff]
        %v798 = vld [vmem:[#allocation10 + $0x38] sm:$0xff]
        %v799 = vld [vmem:[#allocation10 + $0x40] sm:$0x1]
        %v800 = vlaneseq
        %v801 = vshrl.u32 %v800, 7
        %v802 = vsub.s32 0, %v801
        %v803 = vrot.slane %v799, %v802
        %v805 = vsel %vm433, %v790, 0
        %807 = vmatprep.subr.mxu0 0.0
        %808 = vmatpush1.msra.mxu0 %v791
        %809 = vmatprep.subr.mxu0 0.0
        %810 = vmatpush1.msra.mxu0 %v792
        %811 = vmatprep.subr.mxu0 0.0
        %812 = vmatpush1.msra.mxu0 %v793
        %813 = vmatprep.subr.mxu0 0.0
        %814 = vmatpush1.msra.mxu0 %v794
        %815 = vmatprep.subr.mxu0 0.0
        %816 = vmatpush1.msra.mxu0 %v795
        %817 = vmatprep.subr.mxu0 0.0
        %818 = vmatpush1.msra.mxu0 %v796
        %819 = vmatprep.subr.mxu0 0.0
        %820 = vmatpush1.msra.mxu0 %v797
        %821 = vmatprep.subr.mxu0 0.0
        %822 = vmatpush1.msra.mxu0 %v798
        %823 = vmatprep.subr.mxu0 0.0
        %824 = vmatpush1.msra.mxu0 0.0
        %825 = vmatprep.subr.mxu0 0.0
        %826 = vmatpush1.msra.mxu0 0.0
        %827 = vmatprep.subr.mxu0 0.0
        %828 = vmatpush1.msra.mxu0 0.0
        %829 = vmatprep.subr.mxu0 0.0
        %830 = vmatpush1.msra.mxu0 0.0
        %831 = vmatprep.subr.mxu0 0.0
        %832 = vmatpush1.msra.mxu0 0.0
        %833 = vmatprep.subr.mxu0 0.0
        %834 = vmatpush1.msra.mxu0 0.0
        %835 = vmatprep.subr.mxu0 0.0
        %836 = vmatpush1.msra.mxu0 0.0
        %837 = vmatprep.subr.mxu0 0.0
        %838 = vmatpush1.msra.mxu0 0.0
        %839 = vmatprep.subr.mxu0 0.0
        %840 = vmatpush1.msra.mxu0 0.0
        %841 = vmatprep.subr.mxu0 0.0
        %842 = vmatpush1.msra.mxu0 0.0
        %843 = vmatprep.subr.mxu0 0.0
        %844 = vmatpush1.msra.mxu0 0.0
        %845 = vmatprep.subr.mxu0 0.0
        %846 = vmatpush1.msra.mxu0 0.0
        %847 = vmatprep.subr.mxu0 0.0
        %848 = vmatpush1.msra.mxu0 0.0
        %849 = vmatprep.subr.mxu0 0.0
        %850 = vmatpush1.msra.mxu0 0.0
        %851 = vmatprep.subr.mxu0 0.0
        %852 = vmatpush1.msra.mxu0 0.0
        %853 = vmatprep.subr.mxu0 0.0
        %854 = vmatpush1.msra.mxu0 0.0
        %855 = vmatprep.subr.mxu0 0.0
        %856 = vmatpush1.msra.mxu0 0.0
        %857 = vmatprep.subr.mxu0 0.0
        %858 = vmatpush1.msra.mxu0 0.0
        %859 = vmatprep.subr.mxu0 0.0
        %860 = vmatpush1.msra.mxu0 0.0
        %861 = vmatprep.subr.mxu0 0.0
        %862 = vmatpush1.msra.mxu0 0.0
        %863 = vmatprep.subr.mxu0 0.0
        %864 = vmatpush1.msra.mxu0 0.0
        %865 = vmatprep.subr.mxu0 0.0
        %866 = vmatpush1.msra.mxu0 0.0
        %867 = vmatprep.subr.mxu0 0.0
        %868 = vmatpush1.msra.mxu0 0.0
        %869 = vmatprep.subr.mxu0 0.0
        %870 = vmatpush1.msra.mxu0 0.0
        %871 = vmatprep.mubr.f32.mxu0 0.0
        %872 = vmatmul.mubr.f32.gmra.mrb[0].mxu0 %v805
        %v873 = vpop.f32.mrb[0].mxu0
        %v874 = vadd.f32 %v803, %v873
        %v875 = vpop.f32.mrb[0].mxu0
        %876 = vdwg.mxu0
        %877 = vrot.lane.b32.xlu0 %v310, 72
        %v878 = vpop.permute.xlu0 %877
        %v880 = vadd.f32 %v874, %v878
        %v881 = vmul.f32 %v880, 3.3333333
        %v882 = vxor.u32 %v881, 2147483648
        %v883 = vmul.f32 %v882, 1.442695
        %v884 = vpow.pop %v883
        %v885 = vadd.f32 %v884, 1.0
        %v886 = vrcp.pop %v885
        %v887 = vmul.f32 1.0, %v886
        %v888 = vld [vmem:[#allocation10 + $0x48] sm:$0xff]
        %v889 = vld [vmem:[#allocation10 + $0x50] sm:$0xff]
        %v890 = vld [vmem:[#allocation10 + $0x58] sm:$0xff]
        %v891 = vld [vmem:[#allocation10 + $0x60] sm:$0xff]
        %v892 = vld [vmem:[#allocation10 + $0x68] sm:$0xff]
        %v893 = vld [vmem:[#allocation10 + $0x70] sm:$0xff]
        %v894 = vld [vmem:[#allocation10 + $0x78] sm:$0xff]
        %v895 = vld [vmem:[#allocation10 + $0x80] sm:$0xff]
        %896 = vmatprep.subr.mxu0 0.0
        %897 = vmatpush1.msra.mxu0 %v888
        %898 = vmatprep.subr.mxu0 0.0
        %899 = vmatpush1.msra.mxu0 %v889
        %900 = vmatprep.subr.mxu0 0.0
        %901 = vmatpush1.msra.mxu0 %v890
        %902 = vmatprep.subr.mxu0 0.0
        %903 = vmatpush1.msra.mxu0 %v891
        %904 = vmatprep.subr.mxu0 0.0
        %905 = vmatpush1.msra.mxu0 %v892
        %906 = vmatprep.subr.mxu0 0.0
        %907 = vmatpush1.msra.mxu0 %v893
        %908 = vmatprep.subr.mxu0 0.0
        %909 = vmatpush1.msra.mxu0 %v894
        %910 = vmatprep.subr.mxu0 0.0
        %911 = vmatpush1.msra.mxu0 %v895
        %912 = vmatprep.subr.mxu0 0.0
        %913 = vmatpush1.msra.mxu0 0.0
        %914 = vmatprep.subr.mxu0 0.0
        %915 = vmatpush1.msra.mxu0 0.0
        %916 = vmatprep.subr.mxu0 0.0
        %917 = vmatpush1.msra.mxu0 0.0
        %918 = vmatprep.subr.mxu0 0.0
        %919 = vmatpush1.msra.mxu0 0.0
        %920 = vmatprep.subr.mxu0 0.0
        %921 = vmatpush1.msra.mxu0 0.0
        %922 = vmatprep.subr.mxu0 0.0
        %923 = vmatpush1.msra.mxu0 0.0
        %924 = vmatprep.subr.mxu0 0.0
        %925 = vmatpush1.msra.mxu0 0.0
        %926 = vmatprep.subr.mxu0 0.0
        %927 = vmatpush1.msra.mxu0 0.0
        %928 = vmatprep.subr.mxu0 0.0
        %929 = vmatpush1.msra.mxu0 0.0
        %930 = vmatprep.subr.mxu0 0.0
        %931 = vmatpush1.msra.mxu0 0.0
        %932 = vmatprep.subr.mxu0 0.0
        %933 = vmatpush1.msra.mxu0 0.0
        %934 = vmatprep.subr.mxu0 0.0
        %935 = vmatpush1.msra.mxu0 0.0
        %936 = vmatprep.subr.mxu0 0.0
        %937 = vmatpush1.msra.mxu0 0.0
        %938 = vmatprep.subr.mxu0 0.0
        %939 = vmatpush1.msra.mxu0 0.0
        %940 = vmatprep.subr.mxu0 0.0
        %941 = vmatpush1.msra.mxu0 0.0
        %942 = vmatprep.subr.mxu0 0.0
        %943 = vmatpush1.msra.mxu0 0.0
        %944 = vmatprep.subr.mxu0 0.0
        %945 = vmatpush1.msra.mxu0 0.0
        %946 = vmatprep.subr.mxu0 0.0
        %947 = vmatpush1.msra.mxu0 0.0
        %948 = vmatprep.subr.mxu0 0.0
        %949 = vmatpush1.msra.mxu0 0.0
        %950 = vmatprep.subr.mxu0 0.0
        %951 = vmatpush1.msra.mxu0 0.0
        %952 = vmatprep.subr.mxu0 0.0
        %953 = vmatpush1.msra.mxu0 0.0
        %954 = vmatprep.subr.mxu0 0.0
        %955 = vmatpush1.msra.mxu0 0.0
        %956 = vmatprep.subr.mxu0 0.0
        %957 = vmatpush1.msra.mxu0 0.0
        %958 = vmatprep.subr.mxu0 0.0
        %959 = vmatpush1.msra.mxu0 0.0
        %960 = vmatprep.mubr.f32.mxu0 0.0
        %961 = vmatmul.mubr.f32.gmra.mrb[0].mxu0 %v805
        %v962 = vpop.f32.mrb[0].mxu0
        %v963 = vadd.f32 0.0, %v962
        %v964 = vpop.f32.mrb[0].mxu0
        %965 = vdwg.mxu0
        %967 = vset.pattern.permute.xlu0 96
        %968 = vperm.xlu0 %967, %v887
        %v969 = vpop.permute.xlu0 %968
        %v971 = vmul.f32 %v969, %v963
        %973 = vrot.lane.b32.xlu0 %v971, 96
        %v974 = vpop.permute.xlu0 %973
        %v976 = vadd.f32 %v963, %v974
        %977 = vset.pattern.permute.xlu0 97
        %978 = vperm.xlu0 %977, %v887
        %v979 = vpop.permute.xlu0 %978
        %v981 = vmul.f32 %v979, %v963
        %983 = vrot.lane.b32.xlu0 %v981, 64
        %v984 = vpop.permute.xlu0 %983
        %v986 = vadd.f32 %v976, %v984
        %v987 = vld [vmem:[#allocation10 + $0x88] sm:$0x1]
        %v988 = vlaneseq
        %v989 = vshrl.u32 %v988, 7
        %v990 = vsub.s32 0, %v989
        %v991 = vrot.slane %v987, %v990
        %v992 = vadd.f32 %v986, %v991
        %v993 = vtanh.pop %v992
        %v994 = vadd.f32 %v874, 1.0
        %v995 = vxor.u32 %v994, 2147483648
        %v996 = vmul.f32 %v995, 1.442695
        %v997 = vpow.pop %v996
        %v998 = vadd.f32 %v997, 1.0
        %v999 = vrcp.pop %v998
        %v1000 = vmul.f32 1.0, %v999
        %v1001 = vmul.f32 %v311, %v1000
        %v1002 = vxor.u32 %v874, 2147483648
        %v1003 = vmul.f32 %v1002, 1.442695
        %v1004 = vpow.pop %v1003
        %v1005 = vadd.f32 %v1004, 1.0
        %v1006 = vrcp.pop %v1005
        %v1007 = vmul.f32 1.0, %v1006
        %v1008 = vmul.f32 %v1007, %v993
        %1010 = vrot.lane.b32.xlu0 %v1008, 32
        %v1011 = vpop.permute.xlu0 %1010
        %v1013 = vadd.f32 %v1001, %v1011
        %v1014 = vtanh.pop %v1013
        %1016 = vrot.lane.b32.xlu0 %v1007, 96
        %v1017 = vpop.permute.xlu0 %1016
        %v1019 = vmul.f32 %v1014, %v1017
        %p1020 = scmp.lt.s32.totalorder %s26, 8
        %s1021 = scalar_select %p1020, 1, 0
        %s1022 = scvt.s32.f32 %s1021
        %v1023 = vstv %s1022
        %v1024 = vmul.f32 %v310, %v1023
        %s1025 = ssub.f32 1.0, %s1022
        %v1026 = vstv %s1025
        %v1027 = vmul.f32 %v616, %v1026
        %1029 = vrot.lane.b32.xlu0 %v1027, 32
        %v1030 = vpop.permute.xlu0 %1029
        %v1032 = vadd.f32 %v1024, %v1030
        %1034 = vrot.lane.b32.xlu0 %v1032, 96
        %v1035 = vpop.permute.xlu0 %1034
        %v1036 = vsel %vm318, %v1035, 0
        %1038 = vmatprep.subr.mxu0 0.0
        %1039 = vmatpush1.msra.mxu0 %v617
        %1040 = vmatprep.subr.mxu0 0.0
        %1041 = vmatpush1.msra.mxu0 0.0
        %1042 = vmatprep.subr.mxu0 0.0
        %1043 = vmatpush1.msra.mxu0 0.0
        %1044 = vmatprep.subr.mxu0 0.0
        %1045 = vmatpush1.msra.mxu0 0.0
        %1046 = vmatprep.subr.mxu0 0.0
        %1047 = vmatpush1.msra.mxu0 0.0
        %1048 = vmatprep.subr.mxu0 0.0
        %1049 = vmatpush1.msra.mxu0 0.0
        %1050 = vmatprep.subr.mxu0 0.0
        %1051 = vmatpush1.msra.mxu0 0.0
        %1052 = vmatprep.subr.mxu0 0.0
        %1053 = vmatpush1.msra.mxu0 0.0
        %1054 = vmatprep.subr.mxu0 0.0
        %1055 = vmatpush1.msra.mxu0 0.0
        %1056 = vmatprep.subr.mxu0 0.0
        %1057 = vmatpush1.msra.mxu0 0.0
        %1058 = vmatprep.subr.mxu0 0.0
        %1059 = vmatpush1.msra.mxu0 0.0
        %1060 = vmatprep.subr.mxu0 0.0
        %1061 = vmatpush1.msra.mxu0 0.0
        %1062 = vmatprep.subr.mxu0 0.0
        %1063 = vmatpush1.msra.mxu0 0.0
        %1064 = vmatprep.subr.mxu0 0.0
        %1065 = vmatpush1.msra.mxu0 0.0
        %1066 = vmatprep.subr.mxu0 0.0
        %1067 = vmatpush1.msra.mxu0 0.0
        %1068 = vmatprep.subr.mxu0 0.0
        %1069 = vmatpush1.msra.mxu0 0.0
        %1070 = vmatprep.subr.mxu0 0.0
        %1071 = vmatpush1.msra.mxu0 0.0
        %1072 = vmatprep.subr.mxu0 0.0
        %1073 = vmatpush1.msra.mxu0 0.0
        %1074 = vmatprep.subr.mxu0 0.0
        %1075 = vmatpush1.msra.mxu0 0.0
        %1076 = vmatprep.subr.mxu0 0.0
        %1077 = vmatpush1.msra.mxu0 0.0
        %1078 = vmatprep.subr.mxu0 0.0
        %1079 = vmatpush1.msra.mxu0 0.0
        %1080 = vmatprep.subr.mxu0 0.0
        %1081 = vmatpush1.msra.mxu0 0.0
        %1082 = vmatprep.subr.mxu0 0.0
        %1083 = vmatpush1.msra.mxu0 0.0
        %1084 = vmatprep.subr.mxu0 0.0
        %1085 = vmatpush1.msra.mxu0 0.0
        %1086 = vmatprep.subr.mxu0 0.0
        %1087 = vmatpush1.msra.mxu0 0.0
        %1088 = vmatprep.subr.mxu0 0.0
        %1089 = vmatpush1.msra.mxu0 0.0
        %1090 = vmatprep.subr.mxu0 0.0
        %1091 = vmatpush1.msra.mxu0 0.0
        %1092 = vmatprep.subr.mxu0 0.0
        %1093 = vmatpush1.msra.mxu0 0.0
        %1094 = vmatprep.subr.mxu0 0.0
        %1095 = vmatpush1.msra.mxu0 0.0
        %1096 = vmatprep.subr.mxu0 0.0
        %1097 = vmatpush1.msra.mxu0 0.0
        %1098 = vmatprep.subr.mxu0 0.0
        %1099 = vmatpush1.msra.mxu0 0.0
        %1100 = vmatprep.subr.mxu0 0.0
        %1101 = vmatpush1.msra.mxu0 0.0
        %1102 = vmatprep.mubr.f32.mxu0 0.0
        %1103 = vmatmul.mubr.f32.gmra.mrb[0].mxu0 %v1036
        %v1104 = vpop.f32.mrb[0].mxu0
        %v1105 = vadd.f32 0.0, %v1104
        %v1106 = vpop.f32.mrb[0].mxu0
        %1107 = vdwg.mxu0
        %v1108 = vld [vmem:[#allocation10 + $0x260] sm:$0xff]
        %v1109 = vld [vmem:[#allocation10 + $0x268] sm:$0xff]
        %v1110 = vld [vmem:[#allocation10 + $0x270] sm:$0xff]
        %v1111 = vld [vmem:[#allocation10 + $0x278] sm:$0xff]
        %v1112 = vld [vmem:[#allocation10 + $0x280] sm:$0x1]
        %v1113 = vlaneseq
        %v1114 = vshrl.u32 %v1113, 7
        %v1115 = vsub.s32 0, %v1114
        %v1116 = vrot.slane %v1112, %v1115
        %1118 = vrot.lane.b32.xlu0 %v1019, 96
        %v1119 = vpop.permute.xlu0 %1118
        %vm1120 = vcmask 261120
        %v1121 = vsel %vm1120, %v1119, 0
        %1123 = vmatprep.subr.mxu0 0.0
        %1124 = vmatpush1.msra.mxu0 %v1108
        %1125 = vmatprep.subr.mxu0 0.0
        %1126 = vmatpush1.msra.mxu0 %v1109
        %1127 = vmatprep.subr.mxu0 0.0
        %1128 = vmatpush1.msra.mxu0 %v1110
        %1129 = vmatprep.subr.mxu0 0.0
        %1130 = vmatpush1.msra.mxu0 %v1111
        %1131 = vmatprep.subr.mxu0 0.0
        %1132 = vmatpush1.msra.mxu0 0.0
        %1133 = vmatprep.subr.mxu0 0.0
        %1134 = vmatpush1.msra.mxu0 0.0
        %1135 = vmatprep.subr.mxu0 0.0
        %1136 = vmatpush1.msra.mxu0 0.0
        %1137 = vmatprep.subr.mxu0 0.0
        %1138 = vmatpush1.msra.mxu0 0.0
        %1139 = vmatprep.subr.mxu0 0.0
        %1140 = vmatpush1.msra.mxu0 0.0
        %1141 = vmatprep.subr.mxu0 0.0
        %1142 = vmatpush1.msra.mxu0 0.0
        %1143 = vmatprep.subr.mxu0 0.0
        %1144 = vmatpush1.msra.mxu0 0.0
        %1145 = vmatprep.subr.mxu0 0.0
        %1146 = vmatpush1.msra.mxu0 0.0
        %1147 = vmatprep.subr.mxu0 0.0
        %1148 = vmatpush1.msra.mxu0 0.0
        %1149 = vmatprep.subr.mxu0 0.0
        %1150 = vmatpush1.msra.mxu0 0.0
        %1151 = vmatprep.subr.mxu0 0.0
        %1152 = vmatpush1.msra.mxu0 0.0
        %1153 = vmatprep.subr.mxu0 0.0
        %1154 = vmatpush1.msra.mxu0 0.0
        %1155 = vmatprep.subr.mxu0 0.0
        %1156 = vmatpush1.msra.mxu0 0.0
        %1157 = vmatprep.subr.mxu0 0.0
        %1158 = vmatpush1.msra.mxu0 0.0
        %1159 = vmatprep.subr.mxu0 0.0
        %1160 = vmatpush1.msra.mxu0 0.0
        %1161 = vmatprep.subr.mxu0 0.0
        %1162 = vmatpush1.msra.mxu0 0.0
        %1163 = vmatprep.subr.mxu0 0.0
        %1164 = vmatpush1.msra.mxu0 0.0
        %1165 = vmatprep.subr.mxu0 0.0
        %1166 = vmatpush1.msra.mxu0 0.0
        %1167 = vmatprep.subr.mxu0 0.0
        %1168 = vmatpush1.msra.mxu0 0.0
        %1169 = vmatprep.subr.mxu0 0.0
        %1170 = vmatpush1.msra.mxu0 0.0
        %1171 = vmatprep.subr.mxu0 0.0
        %1172 = vmatpush1.msra.mxu0 0.0
        %1173 = vmatprep.subr.mxu0 0.0
        %1174 = vmatpush1.msra.mxu0 0.0
        %1175 = vmatprep.subr.mxu0 0.0
        %1176 = vmatpush1.msra.mxu0 0.0
        %1177 = vmatprep.subr.mxu0 0.0
        %1178 = vmatpush1.msra.mxu0 0.0
        %1179 = vmatprep.subr.mxu0 0.0
        %1180 = vmatpush1.msra.mxu0 0.0
        %1181 = vmatprep.subr.mxu0 0.0
        %1182 = vmatpush1.msra.mxu0 0.0
        %1183 = vmatprep.subr.mxu0 0.0
        %1184 = vmatpush1.msra.mxu0 0.0
        %1185 = vmatprep.subr.mxu0 0.0
        %1186 = vmatpush1.msra.mxu0 0.0
        %1187 = vmatprep.mubr.f32.mxu0 0.0
        %1188 = vmatmul.mubr.f32.gmra.mrb[0].mxu0 %v1121
        %v1189 = vpop.f32.mrb[0].mxu0
        %v1190 = vadd.f32 %v1116, %v1189
        %v1191 = vpop.f32.mrb[0].mxu0
        %1192 = vdwg.mxu0
        %v1193 = vsub.f32 %v1190, %v312
        %v1194 = vmul.f32 %v1105, %v1193
        %v1195 = vadd.f32 %v312, %v1194
        %1197 = vrot.lane.b32.xlu0 %v616, 72
        %v1198 = vpop.permute.xlu0 %1197
        %v1200 = vsel %vm1120, %v1119, %v1013
        %v1201 = vsel %vm433, %v1200, %v781
        %vm1202 = vcmask 588800
        %v1203 = vsel %vm1202, %v1201, %v1198
        %vm1204 = vcmask 654336
        %v1205 = vsel %vm1204, %v1203, 0.0
        %1206 = vst [vmem:[#allocation2] sm:$0xff] %v1205
        %1207 = vst [vmem:[#allocation3] sm:$0xff] %v1195
        %1208 = vrot.lane.b32.xlu0 %v775, 32
        %v1209 = vpop.permute.xlu0 %1208
        %1211 = vrot.lane.b32.xlu0 %v616, 48
        %v1212 = vpop.permute.xlu0 %1211
        %v1214 = vsel %vm1120, %v1119, %v1209
        %v1215 = vsel %vm335, %v1214, %v1212
        %v1216 = vsel %vm337, %v1215, 0.0
        %1217 = vst [vmem:[%s297] sm:$0xff] %v1216
        %p1218 = scmp.eq.s32.totalorder %s26, 11
        // Predicated region
        $region57: #{tardis_sequence.1} parent=35 // pred_check
          %p1219 = pneg %p1218
        $region58: #{tardis_sequence.1} parent=35 // pred_check_branch
          %1221 = sbr.rel (%p1219) target = $region60
        $region59: #{tardis_sequence.1} parent=35 // pred_region
          %1222 = vst [vmem:[%s5] sm:$0xff] %v1205
          %1223 = vst [vmem:[%s6] sm:$0xff] %v1195
        $region60: #{tardis_sequence.1} parent=35 // pred_fallthru
          _
        %s1224 = sand.u32 %s123, 1
        %s1225 = scalar_lea.sflag [#allocation6], %s1224
        %s1226 = sand.u32 %s123, 1
        %s1227 = smul.addr %s1226, 8
        %s1228 = scalar_lea.vmem [#allocation12], %s1227
        // Predicated region
        $region61: #{tardis_sequence.1} parent=35 // pred_check
          %p1229 = pneg %p133
        $region62: #{tardis_sequence.1} parent=35 // pred_check_branch
          %1231 = sbr.rel (%p1229) target = $region64
        $region63: #{tardis_sequence.1} parent=35 // pred_region
          %s1233 = ssub.s32 128, 128
          %1234 = vsyncadd %s1225, %s1233
          %s1235 = smul.addr %s26, 128
          %s1236 = scalar_lea.hbm %s4, %s1235
          %s1238 = sshll.u32 %s1228, 4
          %s1239 = int_to_ptr.vmem [resolvable:$true] %s1238
          %1241 = dma.vmem_to_hbm [thread:$0]  %s1239, 128, %s1236, %s1225
        $region64: #{tardis_sequence.1} parent=35 // pred_fallthru
          _
        // Predicated region
        $region65: #{tardis_sequence.1} parent=35 // pred_check
          %p1242 = pneg %p154
        $region66: #{tardis_sequence.1} parent=35 // pred_check_branch
          %1244 = sbr.rel (%p1242) target = $region68
        $region67: #{tardis_sequence.1} parent=35 // pred_region
          _
        $region68: #{tardis_sequence.1} parent=35 // pred_fallthru
          _
        // Predicated region
        $region69: #{tardis_sequence.1} parent=35 // pred_check
          %p1245 = pneg %p175
        $region70: #{tardis_sequence.1} parent=35 // pred_check_branch
          %1247 = sbr.rel (%p1245) target = $region72
        $region71: #{tardis_sequence.1} parent=35 // pred_region
          _
        $region72: #{tardis_sequence.1} parent=35 // pred_fallthru
          _
        // Predicated region
        $region73: #{tardis_sequence.1} parent=35 // pred_check
          %p1248 = pneg %p154
        $region74: #{tardis_sequence.1} parent=35 // pred_check_branch
          %1250 = sbr.rel (%p1248) target = $region76
        $region75: #{tardis_sequence.1} parent=35 // pred_region
          _
        $region76: #{tardis_sequence.1} parent=35 // pred_fallthru
          _
        // Predicated region
        $region77: #{tardis_sequence.1} parent=35 // pred_check
          %p1251 = pneg %p175
        $region78: #{tardis_sequence.1} parent=35 // pred_check_branch
          %1253 = sbr.rel (%p1251) target = $region80
        $region79: #{tardis_sequence.1} parent=35 // pred_region
          _
        $region80: #{tardis_sequence.1} parent=35 // pred_fallthru
          _
      $region36: #{tardis_sequence.1} parent=5 // pred_fallthru
        _
      %p1254 = scmp.le.s32.totalorder 2, %s21
      // Predicated region
      $region81: #{tardis_sequence.1} parent=5 // pred_check
        %p1255 = pneg %p1254
      $region82: #{tardis_sequence.1} parent=5 // pred_check_branch
        %1257 = sbr.rel (%p1255) target = $region84
      $region83: #{tardis_sequence.1} parent=5 // pred_region
        %s1258 = ssub.s32 %s21, 2
        // Predicated region
        $region85: #{tardis_sequence.1} parent=83 // pred_check
          %p1259 = pneg %p139
        $region86: #{tardis_sequence.1} parent=83 // pred_check_branch
          %1261 = sbr.rel (%p1259) target = $region88
        $region87: #{tardis_sequence.1} parent=83 // pred_region
          %s1262 = sand.u32 %s124, 1
          %s1263 = scalar_lea.sflag [#allocation6], %s1262
          %s1264 = sand.u32 %s124, 1
          %s1265 = smul.addr %s1264, 8
          %s1266 = scalar_lea.vmem [#allocation12], %s1265
          %1267 = dma.done %s1263, 128
        $region88: #{tardis_sequence.1} parent=83 // pred_fallthru
          _
      $region84: #{tardis_sequence.1} parent=5 // pred_fallthru
        _
    $region6: #{tardis_sequence.1} parent=1 // loop_footer
      %s25 = sadd.s32 1, %s21
    $region7: #{tardis_sequence.1} parent=1 // loop_footer_branch
      %20 = sbr.rel target = $region3
    $region8: #{tardis_sequence.1} parent=1 // loop_exit
      _
    %1268 = vsyncpa [#allocation5], 1
    %s1269 = scalar_lea.sflag [#allocation5], 1
    %1270 = vsyncpa %s1269, 1
    %1271 = vsyncpa [#allocation8], 1
    %1272 = vsyncpa [#allocation11], 1
    %1273 = vsyncpa [#allocation6], 1
    %s1274 = scalar_lea.sflag [#allocation6], 1
    %1275 = vsyncpa %s1274, 1

</llo_original>
